<compile_context>
chip_gen: v6e
topology: v6e:2x2x1
jax: 0.10.0
libtpu: 0.0.40
codegen_flags: <defaults>
</compile_context>

<pallas_src>
import math

import jax
import jax.numpy as jnp
from jax import lax
from jax.experimental import pallas as pl
from jax.experimental.pallas import tpu as pltpu


def _make_mha_kernel(num_heads: int, head_size: int, batch_block: int,
                     seq_len: int, embed: int):
    inv_scale = 1.0 / math.sqrt(head_size)
    dn_nn = (((1,), (0,)), ((), ()))   # x @ W      (native MXU contraction)
    dn_tt = (((1,), (1,)), ((), ()))   # W @ x^T    (transpose folded into matmul)

    def kernel(x_ref, wq_ref, wk_ref, wv_ref, wo_ref,
               bq_ref, bk_ref, bv_ref, bo_ref, o_ref):
        f32 = jnp.float32
        bf16 = jnp.bfloat16
        S, E = seq_len, embed

        x_bf = x_ref[...].astype(bf16)                               # (R, E)

        # ---- Q/K/V projections (bf16 MXU operands, f32 accumulation) -------
        # wq_ref / wv_ref / wo_ref arrive pre-transposed (W^T), so these are
        # plain (1,0) contractions with no per-step weight transposes.
        q = lax.dot_general(x_bf, wq_ref[...], dn_nn,
                            preferred_element_type=f32) + bq_ref[...]   # (R, E)
        v = lax.dot_general(x_bf, wv_ref[...], dn_nn,
                            preferred_element_type=f32) + bv_ref[...]   # (R, E)
        # K directly in transposed layout: kT = Wk @ x^T + bk[:, None]  (E, R)
        kT = lax.dot_general(wk_ref[...], x_bf, dn_tt,
                             preferred_element_type=f32) + bk_ref[...]

        # Fold 1/sqrt(Dh) into Q once (replaces H per-head (S,S) multiplies).
        q = q * inv_scale

        q_bf = q.astype(bf16)
        kT_bf = kT.astype(bf16)
        v_bf = v.astype(bf16)
        wo_t = wo_ref[...]           # (E_in, E_out) bf16, loaded once
        bo = bo_ref[...]             # (1, E) f32

        # Per-batch / per-head attention.  batch_block (2) and num_heads (4)
        # are tiny, so the loops are unrolled at trace time; the fused output
        # accumulation keeps only one head's (S,S)/(S,Dh) tiles live.
        # TODO(synk): for production S/H, switch to lax.fori_loop over VMEM
        # scratch (pl.ds slices) and a flash-style online softmax over K tiles
        # with grid (B, S//tq) ["parallel"] x K-tiles ["arbitrary"].
        for j in range(batch_block):
            r0 = j * S
            out_acc = jnp.zeros((S, E), f32)
            for h in range(num_heads):
                lo = h * head_size
                hi = lo + head_size
                qh = q_bf[r0:r0 + S, lo:hi]        # (S, Dh)
                kTh = kT_bf[lo:hi, r0:r0 + S]      # (Dh, S) aligned sublane slice
                vh = v_bf[r0:r0 + S, lo:hi]        # (S, Dh)

                # scores = (q/sqrt(Dh)) @ k^T  -- native (1,0) contraction.
                scores = jnp.dot(qh, kTh, preferred_element_type=f32)   # (S, S)

                # Numerically stable softmax over keys (f32 VPU/EUP math).
                m = jnp.max(scores, axis=-1, keepdims=True)
                p = jnp.exp(scores - m)
                denom = jnp.sum(p, axis=-1, keepdims=True)
                p = p * pl.reciprocal(denom, approx=True)    # EUP, not a VALU divide
                # TODO(synk): train-mode dropout on the attention probabilities
                # is not implemented (eval / dropout=0 path only).

                ctx = jnp.dot(p.astype(bf16), vh,
                              preferred_element_type=f32)                # (S, Dh)

                # Output projection fused per head: ctx_h @ (Wo^T)[lo:hi, :].
                out_acc = out_acc + lax.dot_general(
                    ctx.astype(bf16), wo_t[lo:hi, :], dn_nn,
                    preferred_element_type=f32)                          # (S, E)

            o_ref[r0:r0 + S, :] = (out_acc + bo).astype(o_ref.dtype)

    return kernel


def _vmem_limit_bytes(R: int, S: int, E: int) -> int:
    """Resident-set estimate: weights + biases + double-buffered x/out blocks +
    Q/kT/V activations + one head's scores/probs, with 2x headroom."""
    BF16, F32 = 2, 4
    weights = 4 * E * E * BF16 * 2          # 4 matrices, default double-buffered
    biases = 4 * E * F32 * 2
    io = 2 * R * E * F32 * 2                # x block + out block, double-buffered
    acts = 3 * R * E * (F32 + BF16)         # q, kT, v (f32 + bf16 copies)
    scores = 2 * S * S * F32                # one head's scores + probs
    est = 2 * (weights + biases + io + acts + scores)
    return int(max(est, 32 * 1024 * 1024))


def multi_head_attention(x, params, *, num_heads: int, batch_block: int | None = None):
    """x: [B, S, E] float32.  params: PyTorch-layout weights [E, E], biases [E]."""
    B, S, E = x.shape
    assert E % num_heads == 0, "embedding size must be divisible by num_heads"
    head_size = E // num_heads
    if batch_block is None:
        batch_block = B                      # demo shapes: single grid step
    assert B % batch_block == 0
    nb = B // batch_block
    R = batch_block * S

    f32, bf16 = jnp.float32, jnp.bfloat16

    # One-time weight relayout/cast (amortized across calls when jitted/cached):
    # Q/V/O pre-transposed so in-kernel contractions are all (1,0); K kept in
    # PyTorch [out,in] layout because it is the LHS of the kT = Wk @ x^T matmul.
    wq_t = params["wq"].T.astype(bf16)
    wk = params["wk"].astype(bf16)
    wv_t = params["wv"].T.astype(bf16)
    wo_t = params["wo"].T.astype(bf16)
    bq = params["bq"].reshape(1, E).astype(f32)
    bk = params["bk"].reshape(E, 1).astype(f32)    # column bias for kT layout
    bv = params["bv"].reshape(1, E).astype(f32)
    bo = params["bo"].reshape(1, E).astype(f32)

    x2 = x.reshape(B * S, E)

    kernel = _make_mha_kernel(num_heads, head_size, batch_block, S, E)

    x_spec = pl.BlockSpec((R, E), lambda i: (i, 0))
    w_spec = pl.BlockSpec((E, E), lambda i: (0, 0))    # constant block -> resident
    brow_spec = pl.BlockSpec((1, E), lambda i: (0, 0))
    bcol_spec = pl.BlockSpec((E, 1), lambda i: (0, 0))

    out = pl.pallas_call(
        kernel,
        out_shape=jax.ShapeDtypeStruct((B * S, E), x.dtype),
        grid_spec=pltpu.PrefetchScalarGridSpec(
            num_scalar_prefetch=0,
            grid=(nb,),
            in_specs=[x_spec, w_spec, w_spec, w_spec, w_spec,
                      brow_spec, bcol_spec, brow_spec, brow_spec],
            out_specs=pl.BlockSpec((R, E), lambda i: (i, 0)),
        ),
        compiler_params=pltpu.CompilerParams(
            dimension_semantics=("parallel",),
            vmem_limit_bytes=_vmem_limit_bytes(R, S, E),
        ),
    )(x2, wq_t, wk, wv_t, wo_t, bq, bk, bv, bo)
    return out.reshape(B, S, E)


def _reference(x, params, *, num_heads: int):
    """Plain-JAX f32 replica of the PyTorch forward (eval mode, dropout = identity)."""
    B, S, E = x.shape
    Dh = E // num_heads
    q = x @ params["wq"].T + params["bq"]
    k = x @ params["wk"].T + params["bk"]
    v = x @ params["wv"].T + params["bv"]

    def split(t):
        return t.reshape(B, S, num_heads, Dh).transpose(0, 2, 1, 3)

    q, k, v = split(q), split(k), split(v)
    scores = jnp.einsum("bhqd,bhkd->bhqk", q, k) / math.sqrt(Dh)
    p = jax.nn.softmax(scores, axis=-1)
    ctx = jnp.einsum("bhqk,bhkd->bhqd", p, v)
    ctx = ctx.transpose(0, 2, 1, 3).reshape(B, S, E)
    return ctx @ params["wo"].T + params["bo"]


if __name__ == "__main__":
    # Small shapes consistent with the module; dropout = 0.0 (inference path).
    batch, seq, embedding_size, num_heads = 2, 8, 32, 4

    key = jax.random.PRNGKey(0)
    k_x, k_wq, k_bq, k_wk, k_bk, k_wv, k_bv, k_wo, k_bo = jax.random.split(key, 9)

    x = jax.random.normal(k_x, (batch, seq, embedding_size), dtype=jnp.float32)

    # nn.Linear default init: U(-1/sqrt(fan_in), 1/sqrt(fan_in)); PyTorch
    # weight layout [out_features, in_features] = [E, E], bias [E].
    bound = 1.0 / math.sqrt(embedding_size)

    def init_linear(kw, kb):
        w = jax.random.uniform(kw, (embedding_size, embedding_size),
                               dtype=jnp.float32, minval=-bound, maxval=bound)
        b = jax.random.uniform(kb, (embedding_size,),
                               dtype=jnp.float32, minval=-bound, maxval=bound)
        return w, b

    wq, bq = init_linear(k_wq, k_bq)
    wk, bk = init_linear(k_wk, k_bk)
    wv, bv = init_linear(k_wv, k_bv)
    wo, bo = init_linear(k_wo, k_bo)
    params = dict(wq=wq, bq=bq, wk=wk, bk=bk, wv=wv, bv=bv, wo=wo, bo=bo)

    out = multi_head_attention(x, params, num_heads=num_heads)
    out = jax.block_until_ready(out)

    ref = _reference(x, params, num_heads=num_heads)
    assert out.shape == (batch, seq, embedding_size)
    # bf16 MXU operands + approx reciprocal -> looser tolerance than pure f32.
    assert jnp.allclose(out, ref, atol=3e-2, rtol=3e-2), "mismatch vs reference"

    print("KERNEL_OK")
</pallas_src>

<mosaic_0001>
module attributes {stable_mosaic.version = 11 : i64} {
  func.func @kernel(%arg0: i32, %arg1: memref<16x32xf32, #tpu.memory_space<vmem>>, %arg2: memref<32x32xbf16, #tpu.memory_space<vmem>>, %arg3: memref<32x32xbf16, #tpu.memory_space<vmem>>, %arg4: memref<32x32xbf16, #tpu.memory_space<vmem>>, %arg5: memref<32x32xbf16, #tpu.memory_space<vmem>>, %arg6: memref<1x32xf32, #tpu.memory_space<vmem>>, %arg7: memref<32x1xf32, #tpu.memory_space<vmem>>, %arg8: memref<1x32xf32, #tpu.memory_space<vmem>>, %arg9: memref<1x32xf32, #tpu.memory_space<vmem>>, %arg10: memref<16x32xf32, #tpu.memory_space<vmem>>) attributes {dimension_semantics = [#tpu.dimension_semantics<parallel>], iteration_bounds = array<i64: 1>, scalar_prefetch = 0 : i64, scratch_operands = 0 : i64, tpu.core_type = #tpu.core_type<tc>, window_params = [{transform_indices = @transform_0, window_bounds = array<i64: 16, 32>}, {pipeline_mode = #tpu.pipeline_mode<synchronous>, transform_indices = @transform_1, window_bounds = array<i64: 32, 32>}, {pipeline_mode = #tpu.pipeline_mode<synchronous>, transform_indices = @transform_2, window_bounds = array<i64: 32, 32>}, {pipeline_mode = #tpu.pipeline_mode<synchronous>, transform_indices = @transform_3, window_bounds = array<i64: 32, 32>}, {pipeline_mode = #tpu.pipeline_mode<synchronous>, transform_indices = @transform_4, window_bounds = array<i64: 32, 32>}, {pipeline_mode = #tpu.pipeline_mode<synchronous>, transform_indices = @transform_5, window_bounds = array<i64: 1, 32>}, {pipeline_mode = #tpu.pipeline_mode<synchronous>, transform_indices = @transform_6, window_bounds = array<i64: 32, 1>}, {pipeline_mode = #tpu.pipeline_mode<synchronous>, transform_indices = @transform_7, window_bounds = array<i64: 1, 32>}, {pipeline_mode = #tpu.pipeline_mode<synchronous>, transform_indices = @transform_8, window_bounds = array<i64: 1, 32>}, {transform_indices = @transform_9, window_bounds = array<i64: 16, 32>}]} {
    %c0 = arith.constant 0 : index
    %c0_0 = arith.constant 0 : index
    %0 = vector.load %arg1[%c0, %c0_0] : memref<16x32xf32, #tpu.memory_space<vmem>>, vector<16x32xf32>
    %1 = arith.truncf %0 : vector<16x32xf32> to vector<16x32xbf16>
    %c0_1 = arith.constant 0 : index
    %c0_2 = arith.constant 0 : index
    %2 = vector.load %arg2[%c0_1, %c0_2] : memref<32x32xbf16, #tpu.memory_space<vmem>>, vector<32x32xbf16>
    %cst = arith.constant dense<0.000000e+00> : vector<16x32xf32>
    %3 = tpu.matmul %1, %2, %cst {dimension_numbers = #tpu.dot_dimension_numbers<[1], [0], [0], [1], [0, 0, 1, 1], [], []>} : vector<16x32xbf16>, vector<32x32xbf16>, vector<16x32xf32> -> vector<16x32xf32>
    %c0_3 = arith.constant 0 : index
    %c0_4 = arith.constant 0 : index
    %4 = vector.load %arg6[%c0_3, %c0_4] : memref<1x32xf32, #tpu.memory_space<vmem>>, vector<1x32xf32>
    %5 = vector.broadcast %4 : vector<1x32xf32> to vector<16x32xf32>
    %6 = arith.addf %3, %5 : vector<16x32xf32>
    %c0_5 = arith.constant 0 : index
    %c0_6 = arith.constant 0 : index
    %7 = vector.load %arg4[%c0_5, %c0_6] : memref<32x32xbf16, #tpu.memory_space<vmem>>, vector<32x32xbf16>
    %cst_7 = arith.constant dense<0.000000e+00> : vector<16x32xf32>
    %8 = tpu.matmul %1, %7, %cst_7 {dimension_numbers = #tpu.dot_dimension_numbers<[1], [0], [0], [1], [0, 0, 1, 1], [], []>} : vector<16x32xbf16>, vector<32x32xbf16>, vector<16x32xf32> -> vector<16x32xf32>
    %c0_8 = arith.constant 0 : index
    %c0_9 = arith.constant 0 : index
    %9 = vector.load %arg8[%c0_8, %c0_9] : memref<1x32xf32, #tpu.memory_space<vmem>>, vector<1x32xf32>
    %10 = vector.broadcast %9 : vector<1x32xf32> to vector<16x32xf32>
    %11 = arith.addf %8, %10 : vector<16x32xf32>
    %c0_10 = arith.constant 0 : index
    %c0_11 = arith.constant 0 : index
    %12 = vector.load %arg3[%c0_10, %c0_11] : memref<32x32xbf16, #tpu.memory_space<vmem>>, vector<32x32xbf16>
    %cst_12 = arith.constant dense<0.000000e+00> : vector<32x16xf32>
    %13 = tpu.matmul %12, %1, %cst_12 {dimension_numbers = #tpu.dot_dimension_numbers<[1], [1], [0], [0], [0, 0, 1, 0], [], []>} : vector<32x32xbf16>, vector<16x32xbf16>, vector<32x16xf32> -> vector<32x16xf32>
    %c0_13 = arith.constant 0 : index
    %c0_14 = arith.constant 0 : index
    %14 = vector.load %arg7[%c0_13, %c0_14] : memref<32x1xf32, #tpu.memory_space<vmem>>, vector<32x1xf32>
    %15 = vector.broadcast %14 : vector<32x1xf32> to vector<32x16xf32>
    %16 = arith.addf %13, %15 : vector<32x16xf32>
    %cst_15 = arith.constant 0.353553385 : f32
    %17 = vector.broadcast %cst_15 : f32 to vector<16x32xf32>
    %18 = arith.mulf %6, %17 : vector<16x32xf32>
    %19 = arith.truncf %18 : vector<16x32xf32> to vector<16x32xbf16>
    %20 = arith.truncf %16 : vector<32x16xf32> to vector<32x16xbf16>
    %21 = arith.truncf %11 : vector<16x32xf32> to vector<16x32xbf16>
    %c0_16 = arith.constant 0 : index
    %c0_17 = arith.constant 0 : index
    %22 = vector.load %arg5[%c0_16, %c0_17] : memref<32x32xbf16, #tpu.memory_space<vmem>>, vector<32x32xbf16>
    %c0_18 = arith.constant 0 : index
    %c0_19 = arith.constant 0 : index
    %23 = vector.load %arg9[%c0_18, %c0_19] : memref<1x32xf32, #tpu.memory_space<vmem>>, vector<1x32xf32>
    %cst_20 = arith.constant 0.000000e+00 : f32
    %24 = vector.broadcast %cst_20 : f32 to vector<8x32xf32>
    %25 = vector.extract_strided_slice %19 {offsets = [0, 0], sizes = [8, 8], strides = [1, 1]} : vector<16x32xbf16> to vector<8x8xbf16>
    %26 = vector.extract_strided_slice %20 {offsets = [0, 0], sizes = [8, 8], strides = [1, 1]} : vector<32x16xbf16> to vector<8x8xbf16>
    %27 = vector.extract_strided_slice %21 {offsets = [0, 0], sizes = [8, 8], strides = [1, 1]} : vector<16x32xbf16> to vector<8x8xbf16>
    %cst_21 = arith.constant dense<0.000000e+00> : vector<8x8xf32>
    %28 = tpu.matmul %25, %26, %cst_21 {dimension_numbers = #tpu.dot_dimension_numbers<[1], [0], [0], [1], [0, 0, 1, 1], [], []>} : vector<8x8xbf16>, vector<8x8xbf16>, vector<8x8xf32> -> vector<8x8xf32>
    %cst_22 = arith.constant dense<0xFF800000> : vector<8xf32>
    %29 = vector.multi_reduction <maximumf>, %28, %cst_22 [1] : vector<8x8xf32> to vector<8xf32>
    %30 = vector.shape_cast %29 : vector<8xf32> to vector<8x1xf32>
    %31 = vector.broadcast %30 : vector<8x1xf32> to vector<8x8xf32>
    %32 = arith.subf %28, %31 : vector<8x8xf32>
    %33 = math.exp %32 : vector<8x8xf32>
    %cst_23 = arith.constant dense<0.000000e+00> : vector<8xf32>
    %34 = vector.multi_reduction <add>, %33, %cst_23 [1] : vector<8x8xf32> to vector<8xf32>
    %35 = vector.shape_cast %34 : vector<8xf32> to vector<8x1xf32>
    %36 = tpu.reciprocal %35 {approx = true} : vector<8x1xf32> -> vector<8x1xf32>
    %37 = vector.broadcast %36 : vector<8x1xf32> to vector<8x8xf32>
    %38 = arith.mulf %33, %37 : vector<8x8xf32>
    %39 = arith.truncf %38 : vector<8x8xf32> to vector<8x8xbf16>
    %cst_24 = arith.constant dense<0.000000e+00> : vector<8x8xf32>
    %40 = tpu.matmul %39, %27, %cst_24 {dimension_numbers = #tpu.dot_dimension_numbers<[1], [0], [0], [1], [0, 0, 1, 1], [], []>} : vector<8x8xbf16>, vector<8x8xbf16>, vector<8x8xf32> -> vector<8x8xf32>
    %41 = arith.truncf %40 : vector<8x8xf32> to vector<8x8xbf16>
    %42 = vector.extract_strided_slice %22 {offsets = [0, 0], sizes = [8, 32], strides = [1, 1]} : vector<32x32xbf16> to vector<8x32xbf16>
    %cst_25 = arith.constant dense<0.000000e+00> : vector<8x32xf32>
    %43 = tpu.matmul %41, %42, %cst_25 {dimension_numbers = #tpu.dot_dimension_numbers<[1], [0], [0], [1], [0, 0, 1, 1], [], []>} : vector<8x8xbf16>, vector<8x32xbf16>, vector<8x32xf32> -> vector<8x32xf32>
    %44 = arith.addf %24, %43 : vector<8x32xf32>
    %45 = vector.extract_strided_slice %19 {offsets = [0, 8], sizes = [8, 8], strides = [1, 1]} : vector<16x32xbf16> to vector<8x8xbf16>
    %46 = vector.extract_strided_slice %20 {offsets = [8, 0], sizes = [8, 8], strides = [1, 1]} : vector<32x16xbf16> to vector<8x8xbf16>
    %47 = vector.extract_strided_slice %21 {offsets = [0, 8], sizes = [8, 8], strides = [1, 1]} : vector<16x32xbf16> to vector<8x8xbf16>
    %cst_26 = arith.constant dense<0.000000e+00> : vector<8x8xf32>
    %48 = tpu.matmul %45, %46, %cst_26 {dimension_numbers = #tpu.dot_dimension_numbers<[1], [0], [0], [1], [0, 0, 1, 1], [], []>} : vector<8x8xbf16>, vector<8x8xbf16>, vector<8x8xf32> -> vector<8x8xf32>
    %cst_27 = arith.constant dense<0xFF800000> : vector<8xf32>
    %49 = vector.multi_reduction <maximumf>, %48, %cst_27 [1] : vector<8x8xf32> to vector<8xf32>
    %50 = vector.shape_cast %49 : vector<8xf32> to vector<8x1xf32>
    %51 = vector.broadcast %50 : vector<8x1xf32> to vector<8x8xf32>
    %52 = arith.subf %48, %51 : vector<8x8xf32>
    %53 = math.exp %52 : vector<8x8xf32>
    %cst_28 = arith.constant dense<0.000000e+00> : vector<8xf32>
    %54 = vector.multi_reduction <add>, %53, %cst_28 [1] : vector<8x8xf32> to vector<8xf32>
    %55 = vector.shape_cast %54 : vector<8xf32> to vector<8x1xf32>
    %56 = tpu.reciprocal %55 {approx = true} : vector<8x1xf32> -> vector<8x1xf32>
    %57 = vector.broadcast %56 : vector<8x1xf32> to vector<8x8xf32>
    %58 = arith.mulf %53, %57 : vector<8x8xf32>
    %59 = arith.truncf %58 : vector<8x8xf32> to vector<8x8xbf16>
    %cst_29 = arith.constant dense<0.000000e+00> : vector<8x8xf32>
    %60 = tpu.matmul %59, %47, %cst_29 {dimension_numbers = #tpu.dot_dimension_numbers<[1], [0], [0], [1], [0, 0, 1, 1], [], []>} : vector<8x8xbf16>, vector<8x8xbf16>, vector<8x8xf32> -> vector<8x8xf32>
    %61 = arith.truncf %60 : vector<8x8xf32> to vector<8x8xbf16>
    %62 = vector.extract_strided_slice %22 {offsets = [8, 0], sizes = [8, 32], strides = [1, 1]} : vector<32x32xbf16> to vector<8x32xbf16>
    %cst_30 = arith.constant dense<0.000000e+00> : vector<8x32xf32>
    %63 = tpu.matmul %61, %62, %cst_30 {dimension_numbers = #tpu.dot_dimension_numbers<[1], [0], [0], [1], [0, 0, 1, 1], [], []>} : vector<8x8xbf16>, vector<8x32xbf16>, vector<8x32xf32> -> vector<8x32xf32>
    %64 = arith.addf %44, %63 : vector<8x32xf32>
    %65 = vector.extract_strided_slice %19 {offsets = [0, 16], sizes = [8, 8], strides = [1, 1]} : vector<16x32xbf16> to vector<8x8xbf16>
    %66 = vector.extract_strided_slice %20 {offsets = [16, 0], sizes = [8, 8], strides = [1, 1]} : vector<32x16xbf16> to vector<8x8xbf16>
    %67 = vector.extract_strided_slice %21 {offsets = [0, 16], sizes = [8, 8], strides = [1, 1]} : vector<16x32xbf16> to vector<8x8xbf16>
    %cst_31 = arith.constant dense<0.000000e+00> : vector<8x8xf32>
    %68 = tpu.matmul %65, %66, %cst_31 {dimension_numbers = #tpu.dot_dimension_numbers<[1], [0], [0], [1], [0, 0, 1, 1], [], []>} : vector<8x8xbf16>, vector<8x8xbf16>, vector<8x8xf32> -> vector<8x8xf32>
    %cst_32 = arith.constant dense<0xFF800000> : vector<8xf32>
    %69 = vector.multi_reduction <maximumf>, %68, %cst_32 [1] : vector<8x8xf32> to vector<8xf32>
    %70 = vector.shape_cast %69 : vector<8xf32> to vector<8x1xf32>
    %71 = vector.broadcast %70 : vector<8x1xf32> to vector<8x8xf32>
    %72 = arith.subf %68, %71 : vector<8x8xf32>
    %73 = math.exp %72 : vector<8x8xf32>
    %cst_33 = arith.constant dense<0.000000e+00> : vector<8xf32>
    %74 = vector.multi_reduction <add>, %73, %cst_33 [1] : vector<8x8xf32> to vector<8xf32>
    %75 = vector.shape_cast %74 : vector<8xf32> to vector<8x1xf32>
    %76 = tpu.reciprocal %75 {approx = true} : vector<8x1xf32> -> vector<8x1xf32>
    %77 = vector.broadcast %76 : vector<8x1xf32> to vector<8x8xf32>
    %78 = arith.mulf %73, %77 : vector<8x8xf32>
    %79 = arith.truncf %78 : vector<8x8xf32> to vector<8x8xbf16>
    %cst_34 = arith.constant dense<0.000000e+00> : vector<8x8xf32>
    %80 = tpu.matmul %79, %67, %cst_34 {dimension_numbers = #tpu.dot_dimension_numbers<[1], [0], [0], [1], [0, 0, 1, 1], [], []>} : vector<8x8xbf16>, vector<8x8xbf16>, vector<8x8xf32> -> vector<8x8xf32>
    %81 = arith.truncf %80 : vector<8x8xf32> to vector<8x8xbf16>
    %82 = vector.extract_strided_slice %22 {offsets = [16, 0], sizes = [8, 32], strides = [1, 1]} : vector<32x32xbf16> to vector<8x32xbf16>
    %cst_35 = arith.constant dense<0.000000e+00> : vector<8x32xf32>
    %83 = tpu.matmul %81, %82, %cst_35 {dimension_numbers = #tpu.dot_dimension_numbers<[1], [0], [0], [1], [0, 0, 1, 1], [], []>} : vector<8x8xbf16>, vector<8x32xbf16>, vector<8x32xf32> -> vector<8x32xf32>
    %84 = arith.addf %64, %83 : vector<8x32xf32>
    %85 = vector.extract_strided_slice %19 {offsets = [0, 24], sizes = [8, 8], strides = [1, 1]} : vector<16x32xbf16> to vector<8x8xbf16>
    %86 = vector.extract_strided_slice %20 {offsets = [24, 0], sizes = [8, 8], strides = [1, 1]} : vector<32x16xbf16> to vector<8x8xbf16>
    %87 = vector.extract_strided_slice %21 {offsets = [0, 24], sizes = [8, 8], strides = [1, 1]} : vector<16x32xbf16> to vector<8x8xbf16>
    %cst_36 = arith.constant dense<0.000000e+00> : vector<8x8xf32>
    %88 = tpu.matmul %85, %86, %cst_36 {dimension_numbers = #tpu.dot_dimension_numbers<[1], [0], [0], [1], [0, 0, 1, 1], [], []>} : vector<8x8xbf16>, vector<8x8xbf16>, vector<8x8xf32> -> vector<8x8xf32>
    %cst_37 = arith.constant dense<0xFF800000> : vector<8xf32>
    %89 = vector.multi_reduction <maximumf>, %88, %cst_37 [1] : vector<8x8xf32> to vector<8xf32>
    %90 = vector.shape_cast %89 : vector<8xf32> to vector<8x1xf32>
    %91 = vector.broadcast %90 : vector<8x1xf32> to vector<8x8xf32>
    %92 = arith.subf %88, %91 : vector<8x8xf32>
    %93 = math.exp %92 : vector<8x8xf32>
    %cst_38 = arith.constant dense<0.000000e+00> : vector<8xf32>
    %94 = vector.multi_reduction <add>, %93, %cst_38 [1] : vector<8x8xf32> to vector<8xf32>
    %95 = vector.shape_cast %94 : vector<8xf32> to vector<8x1xf32>
    %96 = tpu.reciprocal %95 {approx = true} : vector<8x1xf32> -> vector<8x1xf32>
    %97 = vector.broadcast %96 : vector<8x1xf32> to vector<8x8xf32>
    %98 = arith.mulf %93, %97 : vector<8x8xf32>
    %99 = arith.truncf %98 : vector<8x8xf32> to vector<8x8xbf16>
    %cst_39 = arith.constant dense<0.000000e+00> : vector<8x8xf32>
    %100 = tpu.matmul %99, %87, %cst_39 {dimension_numbers = #tpu.dot_dimension_numbers<[1], [0], [0], [1], [0, 0, 1, 1], [], []>} : vector<8x8xbf16>, vector<8x8xbf16>, vector<8x8xf32> -> vector<8x8xf32>
    %101 = arith.truncf %100 : vector<8x8xf32> to vector<8x8xbf16>
    %102 = vector.extract_strided_slice %22 {offsets = [24, 0], sizes = [8, 32], strides = [1, 1]} : vector<32x32xbf16> to vector<8x32xbf16>
    %cst_40 = arith.constant dense<0.000000e+00> : vector<8x32xf32>
    %103 = tpu.matmul %101, %102, %cst_40 {dimension_numbers = #tpu.dot_dimension_numbers<[1], [0], [0], [1], [0, 0, 1, 1], [], []>} : vector<8x8xbf16>, vector<8x32xbf16>, vector<8x32xf32> -> vector<8x32xf32>
    %104 = arith.addf %84, %103 : vector<8x32xf32>
    %105 = vector.broadcast %23 : vector<1x32xf32> to vector<8x32xf32>
    %106 = arith.addf %104, %105 : vector<8x32xf32>
    %c0_41 = arith.constant 0 : index
    %c0_42 = arith.constant 0 : index
    %107 = vector.load %arg10[%c0_41, %c0_42] : memref<16x32xf32, #tpu.memory_space<vmem>>, vector<8x32xf32>
    tpu.vector_store %arg10[%c0_41, %c0_42], %106 {strides = array<i32>} : memref<16x32xf32, #tpu.memory_space<vmem>>, vector<8x32xf32>,
    %cst_43 = arith.constant 0.000000e+00 : f32
    %108 = vector.broadcast %cst_43 : f32 to vector<8x32xf32>
    %109 = vector.extract_strided_slice %19 {offsets = [8, 0], sizes = [8, 8], strides = [1, 1]} : vector<16x32xbf16> to vector<8x8xbf16>
    %110 = vector.extract_strided_slice %20 {offsets = [0, 8], sizes = [8, 8], strides = [1, 1]} : vector<32x16xbf16> to vector<8x8xbf16>
    %111 = vector.extract_strided_slice %21 {offsets = [8, 0], sizes = [8, 8], strides = [1, 1]} : vector<16x32xbf16> to vector<8x8xbf16>
    %cst_44 = arith.constant dense<0.000000e+00> : vector<8x8xf32>
    %112 = tpu.matmul %109, %110, %cst_44 {dimension_numbers = #tpu.dot_dimension_numbers<[1], [0], [0], [1], [0, 0, 1, 1], [], []>} : vector<8x8xbf16>, vector<8x8xbf16>, vector<8x8xf32> -> vector<8x8xf32>
    %cst_45 = arith.constant dense<0xFF800000> : vector<8xf32>
    %113 = vector.multi_reduction <maximumf>, %112, %cst_45 [1] : vector<8x8xf32> to vector<8xf32>
    %114 = vector.shape_cast %113 : vector<8xf32> to vector<8x1xf32>
    %115 = vector.broadcast %114 : vector<8x1xf32> to vector<8x8xf32>
    %116 = arith.subf %112, %115 : vector<8x8xf32>
    %117 = math.exp %116 : vector<8x8xf32>
    %cst_46 = arith.constant dense<0.000000e+00> : vector<8xf32>
    %118 = vector.multi_reduction <add>, %117, %cst_46 [1] : vector<8x8xf32> to vector<8xf32>
    %119 = vector.shape_cast %118 : vector<8xf32> to vector<8x1xf32>
    %120 = tpu.reciprocal %119 {approx = true} : vector<8x1xf32> -> vector<8x1xf32>
    %121 = vector.broadcast %120 : vector<8x1xf32> to vector<8x8xf32>
    %122 = arith.mulf %117, %121 : vector<8x8xf32>
    %123 = arith.truncf %122 : vector<8x8xf32> to vector<8x8xbf16>
    %cst_47 = arith.constant dense<0.000000e+00> : vector<8x8xf32>
    %124 = tpu.matmul %123, %111, %cst_47 {dimension_numbers = #tpu.dot_dimension_numbers<[1], [0], [0], [1], [0, 0, 1, 1], [], []>} : vector<8x8xbf16>, vector<8x8xbf16>, vector<8x8xf32> -> vector<8x8xf32>
    %125 = arith.truncf %124 : vector<8x8xf32> to vector<8x8xbf16>
    %126 = vector.extract_strided_slice %22 {offsets = [0, 0], sizes = [8, 32], strides = [1, 1]} : vector<32x32xbf16> to vector<8x32xbf16>
    %cst_48 = arith.constant dense<0.000000e+00> : vector<8x32xf32>
    %127 = tpu.matmul %125, %126, %cst_48 {dimension_numbers = #tpu.dot_dimension_numbers<[1], [0], [0], [1], [0, 0, 1, 1], [], []>} : vector<8x8xbf16>, vector<8x32xbf16>, vector<8x32xf32> -> vector<8x32xf32>
    %128 = arith.addf %108, %127 : vector<8x32xf32>
    %129 = vector.extract_strided_slice %19 {offsets = [8, 8], sizes = [8, 8], strides = [1, 1]} : vector<16x32xbf16> to vector<8x8xbf16>
    %130 = vector.extract_strided_slice %20 {offsets = [8, 8], sizes = [8, 8], strides = [1, 1]} : vector<32x16xbf16> to vector<8x8xbf16>
    %131 = vector.extract_strided_slice %21 {offsets = [8, 8], sizes = [8, 8], strides = [1, 1]} : vector<16x32xbf16> to vector<8x8xbf16>
    %cst_49 = arith.constant dense<0.000000e+00> : vector<8x8xf32>
    %132 = tpu.matmul %129, %130, %cst_49 {dimension_numbers = #tpu.dot_dimension_numbers<[1], [0], [0], [1], [0, 0, 1, 1], [], []>} : vector<8x8xbf16>, vector<8x8xbf16>, vector<8x8xf32> -> vector<8x8xf32>
    %cst_50 = arith.constant dense<0xFF800000> : vector<8xf32>
    %133 = vector.multi_reduction <maximumf>, %132, %cst_50 [1] : vector<8x8xf32> to vector<8xf32>
    %134 = vector.shape_cast %133 : vector<8xf32> to vector<8x1xf32>
    %135 = vector.broadcast %134 : vector<8x1xf32> to vector<8x8xf32>
    %136 = arith.subf %132, %135 : vector<8x8xf32>
    %137 = math.exp %136 : vector<8x8xf32>
    %cst_51 = arith.constant dense<0.000000e+00> : vector<8xf32>
    %138 = vector.multi_reduction <add>, %137, %cst_51 [1] : vector<8x8xf32> to vector<8xf32>
    %139 = vector.shape_cast %138 : vector<8xf32> to vector<8x1xf32>
    %140 = tpu.reciprocal %139 {approx = true} : vector<8x1xf32> -> vector<8x1xf32>
    %141 = vector.broadcast %140 : vector<8x1xf32> to vector<8x8xf32>
    %142 = arith.mulf %137, %141 : vector<8x8xf32>
    %143 = arith.truncf %142 : vector<8x8xf32> to vector<8x8xbf16>
    %cst_52 = arith.constant dense<0.000000e+00> : vector<8x8xf32>
    %144 = tpu.matmul %143, %131, %cst_52 {dimension_numbers = #tpu.dot_dimension_numbers<[1], [0], [0], [1], [0, 0, 1, 1], [], []>} : vector<8x8xbf16>, vector<8x8xbf16>, vector<8x8xf32> -> vector<8x8xf32>
    %145 = arith.truncf %144 : vector<8x8xf32> to vector<8x8xbf16>
    %146 = vector.extract_strided_slice %22 {offsets = [8, 0], sizes = [8, 32], strides = [1, 1]} : vector<32x32xbf16> to vector<8x32xbf16>
    %cst_53 = arith.constant dense<0.000000e+00> : vector<8x32xf32>
    %147 = tpu.matmul %145, %146, %cst_53 {dimension_numbers = #tpu.dot_dimension_numbers<[1], [0], [0], [1], [0, 0, 1, 1], [], []>} : vector<8x8xbf16>, vector<8x32xbf16>, vector<8x32xf32> -> vector<8x32xf32>
    %148 = arith.addf %128, %147 : vector<8x32xf32>
    %149 = vector.extract_strided_slice %19 {offsets = [8, 16], sizes = [8, 8], strides = [1, 1]} : vector<16x32xbf16> to vector<8x8xbf16>
    %150 = vector.extract_strided_slice %20 {offsets = [16, 8], sizes = [8, 8], strides = [1, 1]} : vector<32x16xbf16> to vector<8x8xbf16>
    %151 = vector.extract_strided_slice %21 {offsets = [8, 16], sizes = [8, 8], strides = [1, 1]} : vector<16x32xbf16> to vector<8x8xbf16>
    %cst_54 = arith.constant dense<0.000000e+00> : vector<8x8xf32>
    %152 = tpu.matmul %149, %150, %cst_54 {dimension_numbers = #tpu.dot_dimension_numbers<[1], [0], [0], [1], [0, 0, 1, 1], [], []>} : vector<8x8xbf16>, vector<8x8xbf16>, vector<8x8xf32> -> vector<8x8xf32>
    %cst_55 = arith.constant dense<0xFF800000> : vector<8xf32>
    %153 = vector.multi_reduction <maximumf>, %152, %cst_55 [1] : vector<8x8xf32> to vector<8xf32>
    %154 = vector.shape_cast %153 : vector<8xf32> to vector<8x1xf32>
    %155 = vector.broadcast %154 : vector<8x1xf32> to vector<8x8xf32>
    %156 = arith.subf %152, %155 : vector<8x8xf32>
    %157 = math.exp %156 : vector<8x8xf32>
    %cst_56 = arith.constant dense<0.000000e+00> : vector<8xf32>
    %158 = vector.multi_reduction <add>, %157, %cst_56 [1] : vector<8x8xf32> to vector<8xf32>
    %159 = vector.shape_cast %158 : vector<8xf32> to vector<8x1xf32>
    %160 = tpu.reciprocal %159 {approx = true} : vector<8x1xf32> -> vector<8x1xf32>
    %161 = vector.broadcast %160 : vector<8x1xf32> to vector<8x8xf32>
    %162 = arith.mulf %157, %161 : vector<8x8xf32>
    %163 = arith.truncf %162 : vector<8x8xf32> to vector<8x8xbf16>
    %cst_57 = arith.constant dense<0.000000e+00> : vector<8x8xf32>
    %164 = tpu.matmul %163, %151, %cst_57 {dimension_numbers = #tpu.dot_dimension_numbers<[1], [0], [0], [1], [0, 0, 1, 1], [], []>} : vector<8x8xbf16>, vector<8x8xbf16>, vector<8x8xf32> -> vector<8x8xf32>
    %165 = arith.truncf %164 : vector<8x8xf32> to vector<8x8xbf16>
    %166 = vector.extract_strided_slice %22 {offsets = [16, 0], sizes = [8, 32], strides = [1, 1]} : vector<32x32xbf16> to vector<8x32xbf16>
    %cst_58 = arith.constant dense<0.000000e+00> : vector<8x32xf32>
    %167 = tpu.matmul %165, %166, %cst_58 {dimension_numbers = #tpu.dot_dimension_numbers<[1], [0], [0], [1], [0, 0, 1, 1], [], []>} : vector<8x8xbf16>, vector<8x32xbf16>, vector<8x32xf32> -> vector<8x32xf32>
    %168 = arith.addf %148, %167 : vector<8x32xf32>
    %169 = vector.extract_strided_slice %19 {offsets = [8, 24], sizes = [8, 8], strides = [1, 1]} : vector<16x32xbf16> to vector<8x8xbf16>
    %170 = vector.extract_strided_slice %20 {offsets = [24, 8], sizes = [8, 8], strides = [1, 1]} : vector<32x16xbf16> to vector<8x8xbf16>
    %171 = vector.extract_strided_slice %21 {offsets = [8, 24], sizes = [8, 8], strides = [1, 1]} : vector<16x32xbf16> to vector<8x8xbf16>
    %cst_59 = arith.constant dense<0.000000e+00> : vector<8x8xf32>
    %172 = tpu.matmul %169, %170, %cst_59 {dimension_numbers = #tpu.dot_dimension_numbers<[1], [0], [0], [1], [0, 0, 1, 1], [], []>} : vector<8x8xbf16>, vector<8x8xbf16>, vector<8x8xf32> -> vector<8x8xf32>
    %cst_60 = arith.constant dense<0xFF800000> : vector<8xf32>
    %173 = vector.multi_reduction <maximumf>, %172, %cst_60 [1] : vector<8x8xf32> to vector<8xf32>
    %174 = vector.shape_cast %173 : vector<8xf32> to vector<8x1xf32>
    %175 = vector.broadcast %174 : vector<8x1xf32> to vector<8x8xf32>
    %176 = arith.subf %172, %175 : vector<8x8xf32>
    %177 = math.exp %176 : vector<8x8xf32>
    %cst_61 = arith.constant dense<0.000000e+00> : vector<8xf32>
    %178 = vector.multi_reduction <add>, %177, %cst_61 [1] : vector<8x8xf32> to vector<8xf32>
    %179 = vector.shape_cast %178 : vector<8xf32> to vector<8x1xf32>
    %180 = tpu.reciprocal %179 {approx = true} : vector<8x1xf32> -> vector<8x1xf32>
    %181 = vector.broadcast %180 : vector<8x1xf32> to vector<8x8xf32>
    %182 = arith.mulf %177, %181 : vector<8x8xf32>
    %183 = arith.truncf %182 : vector<8x8xf32> to vector<8x8xbf16>
    %cst_62 = arith.constant dense<0.000000e+00> : vector<8x8xf32>
    %184 = tpu.matmul %183, %171, %cst_62 {dimension_numbers = #tpu.dot_dimension_numbers<[1], [0], [0], [1], [0, 0, 1, 1], [], []>} : vector<8x8xbf16>, vector<8x8xbf16>, vector<8x8xf32> -> vector<8x8xf32>
    %185 = arith.truncf %184 : vector<8x8xf32> to vector<8x8xbf16>
    %186 = vector.extract_strided_slice %22 {offsets = [24, 0], sizes = [8, 32], strides = [1, 1]} : vector<32x32xbf16> to vector<8x32xbf16>
    %cst_63 = arith.constant dense<0.000000e+00> : vector<8x32xf32>
    %187 = tpu.matmul %185, %186, %cst_63 {dimension_numbers = #tpu.dot_dimension_numbers<[1], [0], [0], [1], [0, 0, 1, 1], [], []>} : vector<8x8xbf16>, vector<8x32xbf16>, vector<8x32xf32> -> vector<8x32xf32>
    %188 = arith.addf %168, %187 : vector<8x32xf32>
    %189 = vector.broadcast %23 : vector<1x32xf32> to vector<8x32xf32>
    %190 = arith.addf %188, %189 : vector<8x32xf32>
    %c8 = arith.constant 8 : index
    %c0_64 = arith.constant 0 : index
    %191 = vector.load %arg10[%c8, %c0_64] : memref<16x32xf32, #tpu.memory_space<vmem>>, vector<8x32xf32>
    tpu.vector_store %arg10[%c8, %c0_64], %190 {strides = array<i32>} : memref<16x32xf32, #tpu.memory_space<vmem>>, vector<8x32xf32>,
    return
  }
  func.func @transform_0(%arg0: i32) -> (i32, i32) {
    %c0_i32 = arith.constant 0 : i32
    %c0_i32_0 = arith.constant 0 : i32
    return %arg0, %c0_i32 : i32, i32
  }
  func.func @transform_1(%arg0: i32) -> (i32, i32) {
    %c0_i32 = arith.constant 0 : i32
    %c0_i32_0 = arith.constant 0 : i32
    %c0_i32_1 = arith.constant 0 : i32
    return %c0_i32, %c0_i32_0 : i32, i32
  }
  func.func @transform_2(%arg0: i32) -> (i32, i32) {
    %c0_i32 = arith.constant 0 : i32
    %c0_i32_0 = arith.constant 0 : i32
    %c0_i32_1 = arith.constant 0 : i32
    return %c0_i32, %c0_i32_0 : i32, i32
  }
  func.func @transform_3(%arg0: i32) -> (i32, i32) {
    %c0_i32 = arith.constant 0 : i32
    %c0_i32_0 = arith.constant 0 : i32
    %c0_i32_1 = arith.constant 0 : i32
    return %c0_i32, %c0_i32_0 : i32, i32
  }
  func.func @transform_4(%arg0: i32) -> (i32, i32) {
    %c0_i32 = arith.constant 0 : i32
    %c0_i32_0 = arith.constant 0 : i32
    %c0_i32_1 = arith.constant 0 : i32
    return %c0_i32, %c0_i32_0 : i32, i32
  }
  func.func @transform_5(%arg0: i32) -> (i32, i32) {
    %c0_i32 = arith.constant 0 : i32
    %c0_i32_0 = arith.constant 0 : i32
    %c0_i32_1 = arith.constant 0 : i32
    return %c0_i32, %c0_i32_0 : i32, i32
  }
  func.func @transform_6(%arg0: i32) -> (i32, i32) {
    %c0_i32 = arith.constant 0 : i32
    %c0_i32_0 = arith.constant 0 : i32
    %c0_i32_1 = arith.constant 0 : i32
    return %c0_i32, %c0_i32_0 : i32, i32
  }
  func.func @transform_7(%arg0: i32) -> (i32, i32) {
    %c0_i32 = arith.constant 0 : i32
    %c0_i32_0 = arith.constant 0 : i32
    %c0_i32_1 = arith.constant 0 : i32
    return %c0_i32, %c0_i32_0 : i32, i32
  }
  func.func @transform_8(%arg0: i32) -> (i32, i32) {
    %c0_i32 = arith.constant 0 : i32
    %c0_i32_0 = arith.constant 0 : i32
    %c0_i32_1 = arith.constant 0 : i32
    return %c0_i32, %c0_i32_0 : i32, i32
  }
  func.func @transform_9(%arg0: i32) -> (i32, i32) {
    %c0_i32 = arith.constant 0 : i32
    %c0_i32_0 = arith.constant 0 : i32
    return %arg0, %c0_i32 : i32, i32
  }
}

</mosaic_0001>

<llo_original>
// kernel: tpu_custom_call.1
$region0: #{tpu_custom_call.1}
  #allocation0 [shape = 'u32[]', space=smem, size = 0x4, offset = 0x4, fixed_abs, tag = 'smem constant byte address 0x4 - core index']
  #allocation1 [shape = 'u32[144,128]{1,0:T(1,128)}', space=vmem, size = 0x12000, scoped, tag = 'internal scratch']
  %s0 = inlined_call_operand.vmem [shape: f32[16,32], index: 0, kind: input, shape index: {}]
  %s1 = inlined_call_operand.vmem [shape: bf16[32,32], index: 1, kind: input, shape index: {}]
  %s2 = inlined_call_operand.hbm [shape: bf16[32,32], index: 2, kind: input, shape index: {}]
  %s3 = inlined_call_operand.hbm [shape: bf16[32,32], index: 3, kind: input, shape index: {}]
  %s4 = inlined_call_operand.hbm [shape: bf16[32,32], index: 4, kind: input, shape index: {}]
  %s5 = inlined_call_operand.vmem [shape: f32[1,32], index: 5, kind: input, shape index: {}]
  %s6 = inlined_call_operand.vmem [shape: f32[32,1], index: 6, kind: input, shape index: {}]
  %s7 = inlined_call_operand.vmem [shape: f32[1,32], index: 7, kind: input, shape index: {}]
  %s8 = inlined_call_operand.vmem [shape: f32[1,32], index: 8, kind: input, shape index: {}]
  %s9 = inlined_call_operand.hbm [shape: f32[16,32], index: 9, kind: output, shape index: {}]
  %s10 = sld [smem:[#allocation0]]
  $region58: #{tpu_custom_call.1} parent=0
    _
  %s12 = ssub.s32 1, %s10
  %s13 = scalar_select 0, %s12, %s10
  $region1: #{tpu_custom_call.1} parent=0
    #allocation2 [shape = 'u8[8192]{0}', space=vmem, size = 0x2000, scoped, tag = 'input window, operand 2, single buffered']
    #allocation3 [shape = 's32[1]{0}', space=sflag, size = 0x4, scoped, tag = 'scoped memory for tpu_custom_call.1']
    #allocation4 [shape = 's32[1]{0}', space=sflag, size = 0x4, scoped, tag = 'scoped memory for tpu_custom_call.1']
    #allocation5 [shape = 'u8[8192]{0}', space=vmem, size = 0x2000, scoped, tag = 'input window, operand 3, single buffered']
    #allocation6 [shape = 's32[1]{0}', space=sflag, size = 0x4, scoped, tag = 'scoped memory for tpu_custom_call.1']
    #allocation7 [shape = 'u8[8192]{0}', space=vmem, size = 0x2000, scoped, tag = 'input window, operand 4, single buffered']
    #allocation8 [shape = 'u8[8192]{0}', space=vmem, size = 0x2000, scoped, tag = 'output window, operand 0, single buffered']
    %14 = vsyncpa [#allocation3], 0
    %15 = vsyncpa [#allocation6], 0
    %16 = vsyncpa [#allocation4], 0
    // Predicated region
    $region2: #{tpu_custom_call.1} parent=1 // pred_check
      _
    $region3: #{tpu_custom_call.1} parent=1 // pred_check_branch
      %18 = sbr.rel (0) target = $region5
    $region4: #{tpu_custom_call.1} parent=1 // pred_region
      _
    $region5: #{tpu_custom_call.1} parent=1 // pred_fallthru
      _
    // Predicated region
    $region6: #{tpu_custom_call.1} parent=1 // pred_check
      _
    $region7: #{tpu_custom_call.1} parent=1 // pred_check_branch
      %20 = sbr.rel (0) target = $region9
    $region8: #{tpu_custom_call.1} parent=1 // pred_region
      _
    $region9: #{tpu_custom_call.1} parent=1 // pred_fallthru
      _
    // Predicated region
    $region10: #{tpu_custom_call.1} parent=1 // pred_check
      _
    $region11: #{tpu_custom_call.1} parent=1 // pred_check_branch
      %22 = sbr.rel (0) target = $region13
    $region12: #{tpu_custom_call.1} parent=1 // pred_region
      %s24 = ssub.s32 256, 256
      %25 = vsyncadd [#allocation3], %s24
      %s26 = sshll.u32 [#allocation2], 4
      %s27 = int_to_ptr.vmem [resolvable:$true] %s26
      %32 = dma.hbm_to_vmem [thread:$0]  %s2, 256, %s27, [#allocation3], 64, 64, 4
    $region13: #{tpu_custom_call.1} parent=1 // pred_fallthru
      _
    // Predicated region
    $region14: #{tpu_custom_call.1} parent=1 // pred_check
      _
    $region15: #{tpu_custom_call.1} parent=1 // pred_check_branch
      %34 = sbr.rel (0) target = $region17
    $region16: #{tpu_custom_call.1} parent=1 // pred_region
      %s36 = ssub.s32 256, 256
      %37 = vsyncadd [#allocation6], %s36
      %s38 = sshll.u32 [#allocation5], 4
      %s39 = int_to_ptr.vmem [resolvable:$true] %s38
      %44 = dma.hbm_to_vmem [thread:$0]  %s3, 256, %s39, [#allocation6], 64, 64, 4
    $region17: #{tpu_custom_call.1} parent=1 // pred_fallthru
      _
    // Predicated region
    $region18: #{tpu_custom_call.1} parent=1 // pred_check
      _
    $region19: #{tpu_custom_call.1} parent=1 // pred_check_branch
      %46 = sbr.rel (0) target = $region21
    $region20: #{tpu_custom_call.1} parent=1 // pred_region
      %s48 = ssub.s32 256, 256
      %49 = vsyncadd [#allocation6], %s48
      %s50 = sshll.u32 [#allocation7], 4
      %s51 = int_to_ptr.vmem [resolvable:$true] %s50
      %56 = dma.hbm_to_vmem [thread:$0]  %s4, 256, %s51, [#allocation6], 64, 64, 4
    $region21: #{tpu_custom_call.1} parent=1 // pred_fallthru
      _
    // Predicated region
    $region22: #{tpu_custom_call.1} parent=1 // pred_check
      _
    $region23: #{tpu_custom_call.1} parent=1 // pred_check_branch
      %58 = sbr.rel (0) target = $region25
    $region24: #{tpu_custom_call.1} parent=1 // pred_region
      _
    $region25: #{tpu_custom_call.1} parent=1 // pred_fallthru
      _
    // Predicated region
    $region26: #{tpu_custom_call.1} parent=1 // pred_check
      _
    $region27: #{tpu_custom_call.1} parent=1 // pred_check_branch
      %60 = sbr.rel (0) target = $region29
    $region28: #{tpu_custom_call.1} parent=1 // pred_region
      _
    $region29: #{tpu_custom_call.1} parent=1 // pred_fallthru
      _
    // Predicated region
    $region30: #{tpu_custom_call.1} parent=1 // pred_check
      _
    $region31: #{tpu_custom_call.1} parent=1 // pred_check_branch
      %62 = sbr.rel (0) target = $region33
    $region32: #{tpu_custom_call.1} parent=1 // pred_region
      _
    $region33: #{tpu_custom_call.1} parent=1 // pred_fallthru
      _
    // Predicated region
    $region34: #{tpu_custom_call.1} parent=1 // pred_check
      _
    $region35: #{tpu_custom_call.1} parent=1 // pred_check_branch
      %64 = sbr.rel (0) target = $region37
    $region36: #{tpu_custom_call.1} parent=1 // pred_region
      _
    $region37: #{tpu_custom_call.1} parent=1 // pred_fallthru
      _
    // Predicated region
    $region38: #{tpu_custom_call.1} parent=1 // pred_check
      _
    $region39: #{tpu_custom_call.1} parent=1 // pred_check_branch
      %66 = sbr.rel (0) target = $region41
    $region40: #{tpu_custom_call.1} parent=1 // pred_region
      %67 = dma.done [#allocation3], 256
    $region41: #{tpu_custom_call.1} parent=1 // pred_fallthru
      _
    // Predicated region
    $region42: #{tpu_custom_call.1} parent=1 // pred_check
      _
    $region43: #{tpu_custom_call.1} parent=1 // pred_check_branch
      %69 = sbr.rel (0) target = $region45
    $region44: #{tpu_custom_call.1} parent=1 // pred_region
      %70 = dma.done [#allocation6], 256
    $region45: #{tpu_custom_call.1} parent=1 // pred_fallthru
      _
    // Predicated region
    $region46: #{tpu_custom_call.1} parent=1 // pred_check
      _
    $region47: #{tpu_custom_call.1} parent=1 // pred_check_branch
      %72 = sbr.rel (0) target = $region49
    $region48: #{tpu_custom_call.1} parent=1 // pred_region
      %73 = dma.done [#allocation6], 256
    $region49: #{tpu_custom_call.1} parent=1 // pred_fallthru
      _
    %v75 = vld [vmem:[%s0] sm:$0xff]
    %v76 = vld [vmem:[%s0 + $0x8] sm:$0xff]
    %v77 = vpack.c.bf16 %v76, %v75
    %v78 = vld [vmem:[%s1] sm:$0xf]
    %v79 = vld [vmem:[%s1 + $0x4] sm:$0xf]
    %v80 = vld [vmem:[%s1 + $0x8] sm:$0xf]
    %v81 = vld [vmem:[%s1 + $0xc] sm:$0xf]
    %v82 = vld [vmem:[%s5] sm:$0x1]
    %v84 = vlaneseq
    %v85 = vshrl.u32 %v84, 7
    %v86 = vsub.s32 0, %v85
    %v87 = vrot.slane %v82, %v86
    %v93 = vunpack.c.l.b16 %v78
    %v94 = vunpack.c.l.b16 %v79
    %v95 = vunpack.c.l.b16 %v80
    %v96 = vunpack.c.l.b16 %v81
    %v97 = vpack.c.b16 %v94, %v93
    %v98 = vpack.c.b16 %v96, %v95
    %vm101 = vcmask 261120
    %v103 = vsel %vm101, %v77, 0
    %105 = vmatprep.subr.bf16.mxu0 0
    %106 = vmatpush1.bf16.msra.mxu0 0
    %107 = vmatprep.subr.bf16.mxu0 0
    %108 = vmatpush1.bf16.msra.mxu0 0
    %109 = vmatprep.subr.bf16.mxu0 0
    %110 = vmatpush1.bf16.msra.mxu0 0
    %111 = vmatprep.subr.bf16.mxu0 0
    %112 = vmatpush1.bf16.msra.mxu0 0
    %113 = vmatprep.subr.bf16.mxu0 0
    %114 = vmatpush1.bf16.msra.mxu0 0
    %115 = vmatprep.subr.bf16.mxu0 0
    %116 = vmatpush1.bf16.msra.mxu0 0
    %117 = vmatprep.subr.bf16.mxu0 0
    %118 = vmatpush1.bf16.msra.mxu0 %v98
    %119 = vmatprep.subr.bf16.mxu0 0
    %120 = vmatpush1.bf16.msra.mxu0 %v97
    %121 = vmatprep.subr.bf16.mxu0 0
    %122 = vmatpush2.bf16.msra.mxu0 0
    %123 = vmatprep.subr.bf16.mxu0 0
    %124 = vmatpush2.bf16.msra.mxu0 0
    %125 = vmatprep.subr.bf16.mxu0 0
    %126 = vmatpush2.bf16.msra.mxu0 0
    %127 = vmatprep.subr.bf16.mxu0 0
    %128 = vmatpush2.bf16.msra.mxu0 0
    %129 = vmatprep.subr.bf16.mxu0 0
    %130 = vmatpush2.bf16.msra.mxu0 0
    %131 = vmatprep.subr.bf16.mxu0 0
    %132 = vmatpush2.bf16.msra.mxu0 0
    %133 = vmatprep.subr.bf16.mxu0 0
    %134 = vmatpush2.bf16.msra.mxu0 0
    %135 = vmatprep.subr.bf16.mxu0 0
    %136 = vmatpush2.bf16.msra.mxu0 0
    %137 = vmatprep.mubr.bf16.mxu0 0
    %138 = vmatmul.mubr.bf16.gmra.mxu0 %v103
    %v139 = vpop.f32.mrf.mxu0
    %v140 = vadd.f32 %v87, %v139
    %v141 = vpop.f32.mrf.mxu0
    %v142 = vpop.f32.mrf.mxu0
    %v143 = vadd.f32 %v87, %v142
    %v144 = vpop.f32.mrf.mxu0
    %145 = vdwg.mxu0
    %v146 = vld [vmem:[#allocation5] sm:$0xf]
    %v147 = vld [vmem:[#allocation5 + $0x4] sm:$0xf]
    %v148 = vld [vmem:[#allocation5 + $0x8] sm:$0xf]
    %v149 = vld [vmem:[#allocation5 + $0xc] sm:$0xf]
    %v150 = vld [vmem:[%s7] sm:$0x1]
    %v152 = vlaneseq
    %v153 = vshrl.u32 %v152, 7
    %v154 = vsub.s32 0, %v153
    %v155 = vrot.slane %v150, %v154
    %v161 = vunpack.c.l.b16 %v146
    %v162 = vunpack.c.l.b16 %v147
    %v163 = vunpack.c.l.b16 %v148
    %v164 = vunpack.c.l.b16 %v149
    %v165 = vpack.c.b16 %v162, %v161
    %v166 = vpack.c.b16 %v164, %v163
    %169 = vmatprep.subr.bf16.mxu0 0
    %170 = vmatpush1.bf16.msra.mxu0 0
    %171 = vmatprep.subr.bf16.mxu0 0
    %172 = vmatpush1.bf16.msra.mxu0 0
    %173 = vmatprep.subr.bf16.mxu0 0
    %174 = vmatpush1.bf16.msra.mxu0 0
    %175 = vmatprep.subr.bf16.mxu0 0
    %176 = vmatpush1.bf16.msra.mxu0 0
    %177 = vmatprep.subr.bf16.mxu0 0
    %178 = vmatpush1.bf16.msra.mxu0 0
    %179 = vmatprep.subr.bf16.mxu0 0
    %180 = vmatpush1.bf16.msra.mxu0 0
    %181 = vmatprep.subr.bf16.mxu0 0
    %182 = vmatpush1.bf16.msra.mxu0 %v166
    %183 = vmatprep.subr.bf16.mxu0 0
    %184 = vmatpush1.bf16.msra.mxu0 %v165
    %185 = vmatprep.subr.bf16.mxu0 0
    %186 = vmatpush2.bf16.msra.mxu0 0
    %187 = vmatprep.subr.bf16.mxu0 0
    %188 = vmatpush2.bf16.msra.mxu0 0
    %189 = vmatprep.subr.bf16.mxu0 0
    %190 = vmatpush2.bf16.msra.mxu0 0
    %191 = vmatprep.subr.bf16.mxu0 0
    %192 = vmatpush2.bf16.msra.mxu0 0
    %193 = vmatprep.subr.bf16.mxu0 0
    %194 = vmatpush2.bf16.msra.mxu0 0
    %195 = vmatprep.subr.bf16.mxu0 0
    %196 = vmatpush2.bf16.msra.mxu0 0
    %197 = vmatprep.subr.bf16.mxu0 0
    %198 = vmatpush2.bf16.msra.mxu0 0
    %199 = vmatprep.subr.bf16.mxu0 0
    %200 = vmatpush2.bf16.msra.mxu0 0
    %201 = vmatprep.mubr.bf16.mxu0 0
    %202 = vmatmul.mubr.bf16.gmra.mxu0 %v103
    %v203 = vpop.f32.mrf.mxu0
    %v204 = vadd.f32 %v155, %v203
    %v205 = vpop.f32.mrf.mxu0
    %v206 = vpop.f32.mrf.mxu0
    %v207 = vadd.f32 %v155, %v206
    %v208 = vpop.f32.mrf.mxu0
    %209 = vdwg.mxu0
    %v210 = vld [vmem:[#allocation2] sm:$0xf]
    %v211 = vld [vmem:[#allocation2 + $0x4] sm:$0xf]
    %v212 = vld [vmem:[#allocation2 + $0x8] sm:$0xf]
    %v213 = vld [vmem:[#allocation2 + $0xc] sm:$0xf]
    %v214 = vld [vmem:[%s6] sm:$0xff]
    %v215 = vld [vmem:[%s6 + $0x8] sm:$0xff]
    %v216 = vld [vmem:[%s6 + $0x10] sm:$0xff]
    %v217 = vld [vmem:[%s6 + $0x18] sm:$0xff]
    %219 = vset.pattern.permute.xlu0 0
    %220 = vperm.xlu0 %219, %v214
    %v221 = vpop.permute.xlu0 %220
    %224 = vset.pattern.permute.xlu0 0
    %225 = vperm.xlu0 %224, %v215
    %v226 = vpop.permute.xlu0 %225
    %229 = vset.pattern.permute.xlu0 0
    %230 = vperm.xlu0 %229, %v216
    %v231 = vpop.permute.xlu0 %230
    %234 = vset.pattern.permute.xlu0 0
    %235 = vperm.xlu0 %234, %v217
    %v236 = vpop.permute.xlu0 %235
    %v242 = vunpack.c.l.b16 %v210
    %v243 = vunpack.c.l.b16 %v211
    %v244 = vunpack.c.l.b16 %v212
    %v245 = vunpack.c.l.b16 %v213
    %v246 = vpack.c.b16 %v243, %v242
    %v247 = vpack.c.b16 %v245, %v244
    %v249 = vsel %vm101, %v246, 0
    %v252 = vsel %vm101, %v247, 0
    %254 = vmatprep.subr.bf16.mxu0 0
    %255 = vmatpush1.bf16.xpose.msra.mxu0 0
    %256 = vmatprep.subr.bf16.mxu0 0
    %257 = vmatpush1.bf16.xpose.msra.mxu0 0
    %258 = vmatprep.subr.bf16.mxu0 0
    %259 = vmatpush1.bf16.xpose.msra.mxu0 0
    %260 = vmatprep.subr.bf16.mxu0 0
    %261 = vmatpush1.bf16.xpose.msra.mxu0 0
    %262 = vmatprep.subr.bf16.mxu0 0
    %263 = vmatpush1.bf16.xpose.msra.mxu0 0
    %264 = vmatprep.subr.bf16.mxu0 0
    %265 = vmatpush1.bf16.xpose.msra.mxu0 0
    %266 = vmatprep.subr.bf16.mxu0 0
    %267 = vmatpush1.bf16.xpose.msra.mxu0 0
    %268 = vmatprep.subr.bf16.mxu0 0
    %269 = vmatpush1.bf16.xpose.msra.mxu0 %v103
    %270 = vmatprep.subr.bf16.mxu0 0
    %271 = vmatpush2.bf16.xpose.msra.mxu0 0
    %272 = vmatprep.subr.bf16.mxu0 0
    %273 = vmatpush2.bf16.xpose.msra.mxu0 0
    %274 = vmatprep.subr.bf16.mxu0 0
    %275 = vmatpush2.bf16.xpose.msra.mxu0 0
    %276 = vmatprep.subr.bf16.mxu0 0
    %277 = vmatpush2.bf16.xpose.msra.mxu0 0
    %278 = vmatprep.subr.bf16.mxu0 0
    %279 = vmatpush2.bf16.xpose.msra.mxu0 0
    %280 = vmatprep.subr.bf16.mxu0 0
    %281 = vmatpush2.bf16.xpose.msra.mxu0 0
    %282 = vmatprep.subr.bf16.mxu0 0
    %283 = vmatpush2.bf16.xpose.msra.mxu0 0
    %284 = vmatprep.subr.bf16.mxu0 0
    %285 = vmatpush2.bf16.xpose.msra.mxu0 0
    %286 = vmatprep.mubr.bf16.mxu0 0
    %287 = vmatmul.mubr.bf16.gmra.mxu0 %v249
    %v288 = vpop.f32.mrf.mxu0
    %v289 = vadd.f32 %v221, %v288
    %v290 = vpop.f32.mrf.mxu0
    %v291 = vpop.f32.mrf.mxu0
    %v292 = vadd.f32 %v226, %v291
    %v293 = vpop.f32.mrf.mxu0
    %294 = vmatprep.mubr.bf16.mxu0 0
    %295 = vmatmul.mubr.bf16.gmra.mxu0 %v252
    %v296 = vpop.f32.mrf.mxu0
    %v297 = vadd.f32 %v231, %v296
    %v298 = vpop.f32.mrf.mxu0
    %v299 = vpop.f32.mrf.mxu0
    %v300 = vadd.f32 %v236, %v299
    %v301 = vpop.f32.mrf.mxu0
    %302 = vdwg.mxu0
    %v303 = vmul.f32 %v140, 0.35355338
    %v304 = vmul.f32 %v143, 0.35355338
    %v305 = vpack.c.bf16 %v304, %v303
    %v306 = vpack.c.bf16 %v292, %v289
    %v307 = vpack.c.bf16 %v300, %v297
    %v308 = vpack.c.bf16 %v207, %v204
    %v309 = vld [vmem:[#allocation7] sm:$0xf]
    %v310 = vld [vmem:[#allocation7 + $0x4] sm:$0xf]
    %v311 = vld [vmem:[#allocation7 + $0x8] sm:$0xf]
    %v312 = vld [vmem:[#allocation7 + $0xc] sm:$0xf]
    %v313 = vld [vmem:[%s8] sm:$0x1]
    %vm314 = vcmask 64512
    %v316 = vsel %vm314, %v305, 0
    %vm318 = vcmask 1043456
    %v320 = vsel %vm318, %v306, 0
    %322 = vmatprep.subr.bf16.mxu0 0
    %323 = vmatpush1.bf16.msra.mxu0 0
    %324 = vmatprep.subr.bf16.mxu0 0
    %325 = vmatpush1.bf16.msra.mxu0 0
    %326 = vmatprep.subr.bf16.mxu0 0
    %327 = vmatpush1.bf16.msra.mxu0 0
    %328 = vmatprep.subr.bf16.mxu0 0
    %329 = vmatpush1.bf16.msra.mxu0 0
    %330 = vmatprep.subr.bf16.mxu0 0
    %331 = vmatpush1.bf16.msra.mxu0 0
    %332 = vmatprep.subr.bf16.mxu0 0
    %333 = vmatpush1.bf16.msra.mxu0 0
    %334 = vmatprep.subr.bf16.mxu0 0
    %335 = vmatpush1.bf16.msra.mxu0 0
    %336 = vmatprep.subr.bf16.mxu0 0
    %337 = vmatpush1.bf16.msra.mxu0 %v320
    %338 = vmatprep.subr.bf16.mxu0 0
    %339 = vmatpush2.bf16.msra.mxu0 0
    %340 = vmatprep.subr.bf16.mxu0 0
    %341 = vmatpush2.bf16.msra.mxu0 0
    %342 = vmatprep.subr.bf16.mxu0 0
    %343 = vmatpush2.bf16.msra.mxu0 0
    %344 = vmatprep.subr.bf16.mxu0 0
    %345 = vmatpush2.bf16.msra.mxu0 0
    %346 = vmatprep.subr.bf16.mxu0 0
    %347 = vmatpush2.bf16.msra.mxu0 0
    %348 = vmatprep.subr.bf16.mxu0 0
    %349 = vmatpush2.bf16.msra.mxu0 0
    %350 = vmatprep.subr.bf16.mxu0 0
    %351 = vmatpush2.bf16.msra.mxu0 0
    %352 = vmatprep.subr.bf16.mxu0 0
    %353 = vmatpush2.bf16.msra.mxu0 0
    %354 = vmatprep.mubr.bf16.mxu0 0
    %355 = vmatmul.mubr.bf16.gmra.mxu0 %v316
    %v356 = vpop.f32.mrf.mxu0
    %v357 = vadd.f32 0.0, %v356
    %v358 = vpop.f32.mrf.mxu0
    %v359 = vpop.f32.mrf.mxu0
    %v360 = vpop.f32.mrf.mxu0
    %361 = vdwg.mxu0
    %v362 = vsel %vm314, %v357, -inf
    %363 = vmax.xlane.f32.xlu0 %v362
    %v364 = vpop.xlane.xlu0 %363
    %v365 = vsub.f32 %v357, %v364
    %v366 = vmul.f32 %v365, 1.442695
    %v367 = vpow.pop %v366
    %v368 = vsel %vm314, %v367, 0.0
    %369 = vadd.xlane.f32.xlu0 %v368
    %v370 = vpop.xlane.xlu0 %369
    %v371 = vrcp.pop %v370
    %v372 = vmul.f32 %v367, %v371
    %v373 = vpack.c.bf16 %v372, %v372
    %v375 = vsel %vm314, %v373, 0
    %v378 = vsel %vm318, %v308, 0
    %380 = vmatprep.subr.bf16.mxu0 0
    %381 = vmatpush1.bf16.msra.mxu0 0
    %382 = vmatprep.subr.bf16.mxu0 0
    %383 = vmatpush1.bf16.msra.mxu0 0
    %384 = vmatprep.subr.bf16.mxu0 0
    %385 = vmatpush1.bf16.msra.mxu0 0
    %386 = vmatprep.subr.bf16.mxu0 0
    %387 = vmatpush1.bf16.msra.mxu0 0
    %388 = vmatprep.subr.bf16.mxu0 0
    %389 = vmatpush1.bf16.msra.mxu0 0
    %390 = vmatprep.subr.bf16.mxu0 0
    %391 = vmatpush1.bf16.msra.mxu0 0
    %392 = vmatprep.subr.bf16.mxu0 0
    %393 = vmatpush1.bf16.msra.mxu0 0
    %394 = vmatprep.subr.bf16.mxu0 0
    %395 = vmatpush1.bf16.msra.mxu0 %v378
    %396 = vmatprep.subr.bf16.mxu0 0
    %397 = vmatpush2.bf16.msra.mxu0 0
    %398 = vmatprep.subr.bf16.mxu0 0
    %399 = vmatpush2.bf16.msra.mxu0 0
    %400 = vmatprep.subr.bf16.mxu0 0
    %401 = vmatpush2.bf16.msra.mxu0 0
    %402 = vmatprep.subr.bf16.mxu0 0
    %403 = vmatpush2.bf16.msra.mxu0 0
    %404 = vmatprep.subr.bf16.mxu0 0
    %405 = vmatpush2.bf16.msra.mxu0 0
    %406 = vmatprep.subr.bf16.mxu0 0
    %407 = vmatpush2.bf16.msra.mxu0 0
    %408 = vmatprep.subr.bf16.mxu0 0
    %409 = vmatpush2.bf16.msra.mxu0 0
    %410 = vmatprep.subr.bf16.mxu0 0
    %411 = vmatpush2.bf16.msra.mxu0 0
    %412 = vmatprep.mubr.bf16.mxu0 0
    %413 = vmatmul.mubr.bf16.gmra.mxu0 %v375
    %v414 = vpop.f32.mrf.mxu0
    %v415 = vadd.f32 0.0, %v414
    %v416 = vpop.f32.mrf.mxu0
    %v417 = vpop.f32.mrf.mxu0
    %v418 = vpop.f32.mrf.mxu0
    %419 = vdwg.mxu0
    %v420 = vpack.c.bf16 %v415, %v415
    %422 = vrot.lane.b32.xlu0 %v305, 120
    %v423 = vpop.permute.xlu0 %422
    %v425 = vrot.slane %v306, 4
    %v427 = vsel %vm314, %v423, 0
    %v430 = vsel %vm318, %v425, 0
    %432 = vmatprep.subr.bf16.mxu0 0
    %433 = vmatpush1.bf16.msra.mxu0 0
    %434 = vmatprep.subr.bf16.mxu0 0
    %435 = vmatpush1.bf16.msra.mxu0 0
    %436 = vmatprep.subr.bf16.mxu0 0
    %437 = vmatpush1.bf16.msra.mxu0 0
    %438 = vmatprep.subr.bf16.mxu0 0
    %439 = vmatpush1.bf16.msra.mxu0 0
    %440 = vmatprep.subr.bf16.mxu0 0
    %441 = vmatpush1.bf16.msra.mxu0 0
    %442 = vmatprep.subr.bf16.mxu0 0
    %443 = vmatpush1.bf16.msra.mxu0 0
    %444 = vmatprep.subr.bf16.mxu0 0
    %445 = vmatpush1.bf16.msra.mxu0 0
    %446 = vmatprep.subr.bf16.mxu0 0
    %447 = vmatpush1.bf16.msra.mxu0 %v430
    %448 = vmatprep.subr.bf16.mxu0 0
    %449 = vmatpush2.bf16.msra.mxu0 0
    %450 = vmatprep.subr.bf16.mxu0 0
    %451 = vmatpush2.bf16.msra.mxu0 0
    %452 = vmatprep.subr.bf16.mxu0 0
    %453 = vmatpush2.bf16.msra.mxu0 0
    %454 = vmatprep.subr.bf16.mxu0 0
    %455 = vmatpush2.bf16.msra.mxu0 0
    %456 = vmatprep.subr.bf16.mxu0 0
    %457 = vmatpush2.bf16.msra.mxu0 0
    %458 = vmatprep.subr.bf16.mxu0 0
    %459 = vmatpush2.bf16.msra.mxu0 0
    %460 = vmatprep.subr.bf16.mxu0 0
    %461 = vmatpush2.bf16.msra.mxu0 0
    %462 = vmatprep.subr.bf16.mxu0 0
    %463 = vmatpush2.bf16.msra.mxu0 0
    %464 = vmatprep.mubr.bf16.mxu0 0
    %465 = vmatmul.mubr.bf16.gmra.mxu0 %v427
    %v466 = vpop.f32.mrf.mxu0
    %v467 = vadd.f32 0.0, %v466
    %v468 = vpop.f32.mrf.mxu0
    %v469 = vpop.f32.mrf.mxu0
    %v470 = vpop.f32.mrf.mxu0
    %471 = vdwg.mxu0
    %v472 = vsel %vm314, %v467, -inf
    %473 = vmax.xlane.f32.xlu0 %v472
    %v474 = vpop.xlane.xlu0 %473
    %v475 = vsub.f32 %v467, %v474
    %v476 = vmul.f32 %v475, 1.442695
    %v477 = vpow.pop %v476
    %v478 = vsel %vm314, %v477, 0.0
    %479 = vadd.xlane.f32.xlu0 %v478
    %v480 = vpop.xlane.xlu0 %479
    %v481 = vrcp.pop %v480
    %v482 = vmul.f32 %v477, %v481
    %v483 = vpack.c.bf16 %v482, %v482
    %485 = vrot.lane.b32.xlu0 %v308, 120
    %v486 = vpop.permute.xlu0 %485
    %v488 = vsel %vm314, %v483, 0
    %v491 = vsel %vm318, %v486, 0
    %493 = vmatprep.subr.bf16.mxu0 0
    %494 = vmatpush1.bf16.msra.mxu0 0
    %495 = vmatprep.subr.bf16.mxu0 0
    %496 = vmatpush1.bf16.msra.mxu0 0
    %497 = vmatprep.subr.bf16.mxu0 0
    %498 = vmatpush1.bf16.msra.mxu0 0
    %499 = vmatprep.subr.bf16.mxu0 0
    %500 = vmatpush1.bf16.msra.mxu0 0
    %501 = vmatprep.subr.bf16.mxu0 0
    %502 = vmatpush1.bf16.msra.mxu0 0
    %503 = vmatprep.subr.bf16.mxu0 0
    %504 = vmatpush1.bf16.msra.mxu0 0
    %505 = vmatprep.subr.bf16.mxu0 0
    %506 = vmatpush1.bf16.msra.mxu0 0
    %507 = vmatprep.subr.bf16.mxu0 0
    %508 = vmatpush1.bf16.msra.mxu0 %v491
    %509 = vmatprep.subr.bf16.mxu0 0
    %510 = vmatpush2.bf16.msra.mxu0 0
    %511 = vmatprep.subr.bf16.mxu0 0
    %512 = vmatpush2.bf16.msra.mxu0 0
    %513 = vmatprep.subr.bf16.mxu0 0
    %514 = vmatpush2.bf16.msra.mxu0 0
    %515 = vmatprep.subr.bf16.mxu0 0
    %516 = vmatpush2.bf16.msra.mxu0 0
    %517 = vmatprep.subr.bf16.mxu0 0
    %518 = vmatpush2.bf16.msra.mxu0 0
    %519 = vmatprep.subr.bf16.mxu0 0
    %520 = vmatpush2.bf16.msra.mxu0 0
    %521 = vmatprep.subr.bf16.mxu0 0
    %522 = vmatpush2.bf16.msra.mxu0 0
    %523 = vmatprep.subr.bf16.mxu0 0
    %524 = vmatpush2.bf16.msra.mxu0 0
    %525 = vmatprep.mubr.bf16.mxu0 0
    %526 = vmatmul.mubr.bf16.gmra.mxu0 %v488
    %v527 = vpop.f32.mrf.mxu0
    %v528 = vadd.f32 0.0, %v527
    %v529 = vpop.f32.mrf.mxu0
    %v530 = vpop.f32.mrf.mxu0
    %v531 = vpop.f32.mrf.mxu0
    %532 = vdwg.mxu0
    %v533 = vpack.c.bf16 %v528, %v528
    %v535 = vsel %vm314, %v533, 0
    %v538 = vsel %vm318, %v310, 0
    %540 = vmatprep.subr.bf16.mxu0 0
    %541 = vmatpush1.bf16.msra.mxu0 0
    %542 = vmatprep.subr.bf16.mxu0 0
    %543 = vmatpush1.bf16.msra.mxu0 0
    %544 = vmatprep.subr.bf16.mxu0 0
    %545 = vmatpush1.bf16.msra.mxu0 0
    %546 = vmatprep.subr.bf16.mxu0 0
    %547 = vmatpush1.bf16.msra.mxu0 0
    %548 = vmatprep.subr.bf16.mxu0 0
    %549 = vmatpush1.bf16.msra.mxu0 0
    %550 = vmatprep.subr.bf16.mxu0 0
    %551 = vmatpush1.bf16.msra.mxu0 0
    %552 = vmatprep.subr.bf16.mxu0 0
    %553 = vmatpush1.bf16.msra.mxu0 0
    %554 = vmatprep.subr.bf16.mxu0 0
    %555 = vmatpush1.bf16.msra.mxu0 %v538
    %556 = vmatprep.subr.bf16.mxu0 0
    %557 = vmatpush2.bf16.msra.mxu0 0
    %558 = vmatprep.subr.bf16.mxu0 0
    %559 = vmatpush2.bf16.msra.mxu0 0
    %560 = vmatprep.subr.bf16.mxu0 0
    %561 = vmatpush2.bf16.msra.mxu0 0
    %562 = vmatprep.subr.bf16.mxu0 0
    %563 = vmatpush2.bf16.msra.mxu0 0
    %564 = vmatprep.subr.bf16.mxu0 0
    %565 = vmatpush2.bf16.msra.mxu0 0
    %566 = vmatprep.subr.bf16.mxu0 0
    %567 = vmatpush2.bf16.msra.mxu0 0
    %568 = vmatprep.subr.bf16.mxu0 0
    %569 = vmatpush2.bf16.msra.mxu0 0
    %570 = vmatprep.subr.bf16.mxu0 0
    %571 = vmatpush2.bf16.msra.mxu0 0
    %572 = vmatprep.mubr.bf16.mxu0 0
    %573 = vmatmul.mubr.bf16.gmra.mxu0 %v535
    %v574 = vpop.f32.mrf.mxu0
    %v575 = vadd.f32 0.0, %v574
    %v576 = vpop.f32.mrf.mxu0
    %v577 = vpop.f32.mrf.mxu0
    %v578 = vpop.f32.mrf.mxu0
    %579 = vdwg.mxu0
    %v581 = vsel %vm314, %v420, 0
    %v584 = vsel %vm318, %v309, 0
    %586 = vmatprep.subr.bf16.mxu0 0
    %587 = vmatpush1.bf16.msra.mxu0 0
    %588 = vmatprep.subr.bf16.mxu0 0
    %589 = vmatpush1.bf16.msra.mxu0 0
    %590 = vmatprep.subr.bf16.mxu0 0
    %591 = vmatpush1.bf16.msra.mxu0 0
    %592 = vmatprep.subr.bf16.mxu0 0
    %593 = vmatpush1.bf16.msra.mxu0 0
    %594 = vmatprep.subr.bf16.mxu0 0
    %595 = vmatpush1.bf16.msra.mxu0 0
    %596 = vmatprep.subr.bf16.mxu0 0
    %597 = vmatpush1.bf16.msra.mxu0 0
    %598 = vmatprep.subr.bf16.mxu0 0
    %599 = vmatpush1.bf16.msra.mxu0 0
    %600 = vmatprep.subr.bf16.mxu0 0
    %601 = vmatpush1.bf16.msra.mxu0 %v584
    %602 = vmatprep.subr.bf16.mxu0 0
    %603 = vmatpush2.bf16.msra.mxu0 0
    %604 = vmatprep.subr.bf16.mxu0 0
    %605 = vmatpush2.bf16.msra.mxu0 0
    %606 = vmatprep.subr.bf16.mxu0 0
    %607 = vmatpush2.bf16.msra.mxu0 0
    %608 = vmatprep.subr.bf16.mxu0 0
    %609 = vmatpush2.bf16.msra.mxu0 0
    %610 = vmatprep.subr.bf16.mxu0 0
    %611 = vmatpush2.bf16.msra.mxu0 0
    %612 = vmatprep.subr.bf16.mxu0 0
    %613 = vmatpush2.bf16.msra.mxu0 0
    %614 = vmatprep.subr.bf16.mxu0 0
    %615 = vmatpush2.bf16.msra.mxu0 0
    %616 = vmatprep.subr.bf16.mxu0 0
    %617 = vmatpush2.bf16.msra.mxu0 0
    %618 = vmatprep.mubr.bf16.mxu0 0
    %619 = vmatmul.mubr.bf16.gmra.mxu0 %v581
    %v620 = vpop.f32.mrf.mxu0
    %v621 = vadd.f32 %v575, %v620
    %v622 = vpop.f32.mrf.mxu0
    %v623 = vpop.f32.mrf.mxu0
    %v624 = vpop.f32.mrf.mxu0
    %625 = vdwg.mxu0
    %626 = vrot.lane.b32.xlu0 %v305, 112
    %v627 = vpop.permute.xlu0 %626
    %v629 = vsel %vm314, %v627, 0
    %v632 = vsel %vm318, %v307, 0
    %634 = vmatprep.subr.bf16.mxu0 0
    %635 = vmatpush1.bf16.msra.mxu0 0
    %636 = vmatprep.subr.bf16.mxu0 0
    %637 = vmatpush1.bf16.msra.mxu0 0
    %638 = vmatprep.subr.bf16.mxu0 0
    %639 = vmatpush1.bf16.msra.mxu0 0
    %640 = vmatprep.subr.bf16.mxu0 0
    %641 = vmatpush1.bf16.msra.mxu0 0
    %642 = vmatprep.subr.bf16.mxu0 0
    %643 = vmatpush1.bf16.msra.mxu0 0
    %644 = vmatprep.subr.bf16.mxu0 0
    %645 = vmatpush1.bf16.msra.mxu0 0
    %646 = vmatprep.subr.bf16.mxu0 0
    %647 = vmatpush1.bf16.msra.mxu0 0
    %648 = vmatprep.subr.bf16.mxu0 0
    %649 = vmatpush1.bf16.msra.mxu0 %v632
    %650 = vmatprep.subr.bf16.mxu0 0
    %651 = vmatpush2.bf16.msra.mxu0 0
    %652 = vmatprep.subr.bf16.mxu0 0
    %653 = vmatpush2.bf16.msra.mxu0 0
    %654 = vmatprep.subr.bf16.mxu0 0
    %655 = vmatpush2.bf16.msra.mxu0 0
    %656 = vmatprep.subr.bf16.mxu0 0
    %657 = vmatpush2.bf16.msra.mxu0 0
    %658 = vmatprep.subr.bf16.mxu0 0
    %659 = vmatpush2.bf16.msra.mxu0 0
    %660 = vmatprep.subr.bf16.mxu0 0
    %661 = vmatpush2.bf16.msra.mxu0 0
    %662 = vmatprep.subr.bf16.mxu0 0
    %663 = vmatpush2.bf16.msra.mxu0 0
    %664 = vmatprep.subr.bf16.mxu0 0
    %665 = vmatpush2.bf16.msra.mxu0 0
    %666 = vmatprep.mubr.bf16.mxu0 0
    %667 = vmatmul.mubr.bf16.gmra.mxu0 %v629
    %v668 = vpop.f32.mrf.mxu0
    %v669 = vadd.f32 0.0, %v668
    %v670 = vpop.f32.mrf.mxu0
    %v671 = vpop.f32.mrf.mxu0
    %v672 = vpop.f32.mrf.mxu0
    %673 = vdwg.mxu0
    %v674 = vsel %vm314, %v669, -inf
    %675 = vmax.xlane.f32.xlu0 %v674
    %v676 = vpop.xlane.xlu0 %675
    %v677 = vsub.f32 %v669, %v676
    %v678 = vmul.f32 %v677, 1.442695
    %v679 = vpow.pop %v678
    %v680 = vsel %vm314, %v679, 0.0
    %681 = vadd.xlane.f32.xlu0 %v680
    %v682 = vpop.xlane.xlu0 %681
    %v683 = vrcp.pop %v682
    %v684 = vmul.f32 %v679, %v683
    %v685 = vpack.c.bf16 %v684, %v684
    %686 = vrot.lane.b32.xlu0 %v308, 112
    %v687 = vpop.permute.xlu0 %686
    %v689 = vsel %vm314, %v685, 0
    %v692 = vsel %vm318, %v687, 0
    %694 = vmatprep.subr.bf16.mxu0 0
    %695 = vmatpush1.bf16.msra.mxu0 0
    %696 = vmatprep.subr.bf16.mxu0 0
    %697 = vmatpush1.bf16.msra.mxu0 0
    %698 = vmatprep.subr.bf16.mxu0 0
    %699 = vmatpush1.bf16.msra.mxu0 0
    %700 = vmatprep.subr.bf16.mxu0 0
    %701 = vmatpush1.bf16.msra.mxu0 0
    %702 = vmatprep.subr.bf16.mxu0 0
    %703 = vmatpush1.bf16.msra.mxu0 0
    %704 = vmatprep.subr.bf16.mxu0 0
    %705 = vmatpush1.bf16.msra.mxu0 0
    %706 = vmatprep.subr.bf16.mxu0 0
    %707 = vmatpush1.bf16.msra.mxu0 0
    %708 = vmatprep.subr.bf16.mxu0 0
    %709 = vmatpush1.bf16.msra.mxu0 %v692
    %710 = vmatprep.subr.bf16.mxu0 0
    %711 = vmatpush2.bf16.msra.mxu0 0
    %712 = vmatprep.subr.bf16.mxu0 0
    %713 = vmatpush2.bf16.msra.mxu0 0
    %714 = vmatprep.subr.bf16.mxu0 0
    %715 = vmatpush2.bf16.msra.mxu0 0
    %716 = vmatprep.subr.bf16.mxu0 0
    %717 = vmatpush2.bf16.msra.mxu0 0
    %718 = vmatprep.subr.bf16.mxu0 0
    %719 = vmatpush2.bf16.msra.mxu0 0
    %720 = vmatprep.subr.bf16.mxu0 0
    %721 = vmatpush2.bf16.msra.mxu0 0
    %722 = vmatprep.subr.bf16.mxu0 0
    %723 = vmatpush2.bf16.msra.mxu0 0
    %724 = vmatprep.subr.bf16.mxu0 0
    %725 = vmatpush2.bf16.msra.mxu0 0
    %726 = vmatprep.mubr.bf16.mxu0 0
    %727 = vmatmul.mubr.bf16.gmra.mxu0 %v689
    %v728 = vpop.f32.mrf.mxu0
    %v729 = vadd.f32 0.0, %v728
    %v730 = vpop.f32.mrf.mxu0
    %v731 = vpop.f32.mrf.mxu0
    %v732 = vpop.f32.mrf.mxu0
    %733 = vdwg.mxu0
    %v734 = vpack.c.bf16 %v729, %v729
    %v736 = vsel %vm314, %v734, 0
    %v739 = vsel %vm318, %v311, 0
    %741 = vmatprep.subr.bf16.mxu0 0
    %742 = vmatpush1.bf16.msra.mxu0 0
    %743 = vmatprep.subr.bf16.mxu0 0
    %744 = vmatpush1.bf16.msra.mxu0 0
    %745 = vmatprep.subr.bf16.mxu0 0
    %746 = vmatpush1.bf16.msra.mxu0 0
    %747 = vmatprep.subr.bf16.mxu0 0
    %748 = vmatpush1.bf16.msra.mxu0 0
    %749 = vmatprep.subr.bf16.mxu0 0
    %750 = vmatpush1.bf16.msra.mxu0 0
    %751 = vmatprep.subr.bf16.mxu0 0
    %752 = vmatpush1.bf16.msra.mxu0 0
    %753 = vmatprep.subr.bf16.mxu0 0
    %754 = vmatpush1.bf16.msra.mxu0 0
    %755 = vmatprep.subr.bf16.mxu0 0
    %756 = vmatpush1.bf16.msra.mxu0 %v739
    %757 = vmatprep.subr.bf16.mxu0 0
    %758 = vmatpush2.bf16.msra.mxu0 0
    %759 = vmatprep.subr.bf16.mxu0 0
    %760 = vmatpush2.bf16.msra.mxu0 0
    %761 = vmatprep.subr.bf16.mxu0 0
    %762 = vmatpush2.bf16.msra.mxu0 0
    %763 = vmatprep.subr.bf16.mxu0 0
    %764 = vmatpush2.bf16.msra.mxu0 0
    %765 = vmatprep.subr.bf16.mxu0 0
    %766 = vmatpush2.bf16.msra.mxu0 0
    %767 = vmatprep.subr.bf16.mxu0 0
    %768 = vmatpush2.bf16.msra.mxu0 0
    %769 = vmatprep.subr.bf16.mxu0 0
    %770 = vmatpush2.bf16.msra.mxu0 0
    %771 = vmatprep.subr.bf16.mxu0 0
    %772 = vmatpush2.bf16.msra.mxu0 0
    %773 = vmatprep.mubr.bf16.mxu0 0
    %774 = vmatmul.mubr.bf16.gmra.mxu0 %v736
    %v775 = vpop.f32.mrf.mxu0
    %v776 = vadd.f32 0.0, %v775
    %v777 = vpop.f32.mrf.mxu0
    %v778 = vpop.f32.mrf.mxu0
    %v779 = vpop.f32.mrf.mxu0
    %780 = vdwg.mxu0
    %v781 = vadd.f32 %v621, %v776
    %782 = vrot.lane.b32.xlu0 %v305, 104
    %v783 = vpop.permute.xlu0 %782
    %v785 = vrot.slane %v307, 4
    %v787 = vsel %vm314, %v783, 0
    %v790 = vsel %vm318, %v785, 0
    %792 = vmatprep.subr.bf16.mxu0 0
    %793 = vmatpush1.bf16.msra.mxu0 0
    %794 = vmatprep.subr.bf16.mxu0 0
    %795 = vmatpush1.bf16.msra.mxu0 0
    %796 = vmatprep.subr.bf16.mxu0 0
    %797 = vmatpush1.bf16.msra.mxu0 0
    %798 = vmatprep.subr.bf16.mxu0 0
    %799 = vmatpush1.bf16.msra.mxu0 0
    %800 = vmatprep.subr.bf16.mxu0 0
    %801 = vmatpush1.bf16.msra.mxu0 0
    %802 = vmatprep.subr.bf16.mxu0 0
    %803 = vmatpush1.bf16.msra.mxu0 0
    %804 = vmatprep.subr.bf16.mxu0 0
    %805 = vmatpush1.bf16.msra.mxu0 0
    %806 = vmatprep.subr.bf16.mxu0 0
    %807 = vmatpush1.bf16.msra.mxu0 %v790
    %808 = vmatprep.subr.bf16.mxu0 0
    %809 = vmatpush2.bf16.msra.mxu0 0
    %810 = vmatprep.subr.bf16.mxu0 0
    %811 = vmatpush2.bf16.msra.mxu0 0
    %812 = vmatprep.subr.bf16.mxu0 0
    %813 = vmatpush2.bf16.msra.mxu0 0
    %814 = vmatprep.subr.bf16.mxu0 0
    %815 = vmatpush2.bf16.msra.mxu0 0
    %816 = vmatprep.subr.bf16.mxu0 0
    %817 = vmatpush2.bf16.msra.mxu0 0
    %818 = vmatprep.subr.bf16.mxu0 0
    %819 = vmatpush2.bf16.msra.mxu0 0
    %820 = vmatprep.subr.bf16.mxu0 0
    %821 = vmatpush2.bf16.msra.mxu0 0
    %822 = vmatprep.subr.bf16.mxu0 0
    %823 = vmatpush2.bf16.msra.mxu0 0
    %824 = vmatprep.mubr.bf16.mxu0 0
    %825 = vmatmul.mubr.bf16.gmra.mxu0 %v787
    %v826 = vpop.f32.mrf.mxu0
    %v827 = vadd.f32 0.0, %v826
    %v828 = vpop.f32.mrf.mxu0
    %v829 = vpop.f32.mrf.mxu0
    %v830 = vpop.f32.mrf.mxu0
    %831 = vdwg.mxu0
    %v832 = vsel %vm314, %v827, -inf
    %833 = vmax.xlane.f32.xlu0 %v832
    %v834 = vpop.xlane.xlu0 %833
    %v835 = vsub.f32 %v827, %v834
    %v836 = vmul.f32 %v835, 1.442695
    %v837 = vpow.pop %v836
    %v838 = vsel %vm314, %v837, 0.0
    %839 = vadd.xlane.f32.xlu0 %v838
    %v840 = vpop.xlane.xlu0 %839
    %v841 = vrcp.pop %v840
    %v842 = vmul.f32 %v837, %v841
    %v843 = vpack.c.bf16 %v842, %v842
    %844 = vrot.lane.b32.xlu0 %v308, 104
    %v845 = vpop.permute.xlu0 %844
    %v847 = vsel %vm314, %v843, 0
    %v850 = vsel %vm318, %v845, 0
    %852 = vmatprep.subr.bf16.mxu0 0
    %853 = vmatpush1.bf16.msra.mxu0 0
    %854 = vmatprep.subr.bf16.mxu0 0
    %855 = vmatpush1.bf16.msra.mxu0 0
    %856 = vmatprep.subr.bf16.mxu0 0
    %857 = vmatpush1.bf16.msra.mxu0 0
    %858 = vmatprep.subr.bf16.mxu0 0
    %859 = vmatpush1.bf16.msra.mxu0 0
    %860 = vmatprep.subr.bf16.mxu0 0
    %861 = vmatpush1.bf16.msra.mxu0 0
    %862 = vmatprep.subr.bf16.mxu0 0
    %863 = vmatpush1.bf16.msra.mxu0 0
    %864 = vmatprep.subr.bf16.mxu0 0
    %865 = vmatpush1.bf16.msra.mxu0 0
    %866 = vmatprep.subr.bf16.mxu0 0
    %867 = vmatpush1.bf16.msra.mxu0 %v850
    %868 = vmatprep.subr.bf16.mxu0 0
    %869 = vmatpush2.bf16.msra.mxu0 0
    %870 = vmatprep.subr.bf16.mxu0 0
    %871 = vmatpush2.bf16.msra.mxu0 0
    %872 = vmatprep.subr.bf16.mxu0 0
    %873 = vmatpush2.bf16.msra.mxu0 0
    %874 = vmatprep.subr.bf16.mxu0 0
    %875 = vmatpush2.bf16.msra.mxu0 0
    %876 = vmatprep.subr.bf16.mxu0 0
    %877 = vmatpush2.bf16.msra.mxu0 0
    %878 = vmatprep.subr.bf16.mxu0 0
    %879 = vmatpush2.bf16.msra.mxu0 0
    %880 = vmatprep.subr.bf16.mxu0 0
    %881 = vmatpush2.bf16.msra.mxu0 0
    %882 = vmatprep.subr.bf16.mxu0 0
    %883 = vmatpush2.bf16.msra.mxu0 0
    %884 = vmatprep.mubr.bf16.mxu0 0
    %885 = vmatmul.mubr.bf16.gmra.mxu0 %v847
    %v886 = vpop.f32.mrf.mxu0
    %v887 = vadd.f32 0.0, %v886
    %v888 = vpop.f32.mrf.mxu0
    %v889 = vpop.f32.mrf.mxu0
    %v890 = vpop.f32.mrf.mxu0
    %891 = vdwg.mxu0
    %v892 = vpack.c.bf16 %v887, %v887
    %v894 = vsel %vm314, %v892, 0
    %v897 = vsel %vm318, %v312, 0
    %899 = vmatprep.subr.bf16.mxu0 0
    %900 = vmatpush1.bf16.msra.mxu0 0
    %901 = vmatprep.subr.bf16.mxu0 0
    %902 = vmatpush1.bf16.msra.mxu0 0
    %903 = vmatprep.subr.bf16.mxu0 0
    %904 = vmatpush1.bf16.msra.mxu0 0
    %905 = vmatprep.subr.bf16.mxu0 0
    %906 = vmatpush1.bf16.msra.mxu0 0
    %907 = vmatprep.subr.bf16.mxu0 0
    %908 = vmatpush1.bf16.msra.mxu0 0
    %909 = vmatprep.subr.bf16.mxu0 0
    %910 = vmatpush1.bf16.msra.mxu0 0
    %911 = vmatprep.subr.bf16.mxu0 0
    %912 = vmatpush1.bf16.msra.mxu0 0
    %913 = vmatprep.subr.bf16.mxu0 0
    %914 = vmatpush1.bf16.msra.mxu0 %v897
    %915 = vmatprep.subr.bf16.mxu0 0
    %916 = vmatpush2.bf16.msra.mxu0 0
    %917 = vmatprep.subr.bf16.mxu0 0
    %918 = vmatpush2.bf16.msra.mxu0 0
    %919 = vmatprep.subr.bf16.mxu0 0
    %920 = vmatpush2.bf16.msra.mxu0 0
    %921 = vmatprep.subr.bf16.mxu0 0
    %922 = vmatpush2.bf16.msra.mxu0 0
    %923 = vmatprep.subr.bf16.mxu0 0
    %924 = vmatpush2.bf16.msra.mxu0 0
    %925 = vmatprep.subr.bf16.mxu0 0
    %926 = vmatpush2.bf16.msra.mxu0 0
    %927 = vmatprep.subr.bf16.mxu0 0
    %928 = vmatpush2.bf16.msra.mxu0 0
    %929 = vmatprep.subr.bf16.mxu0 0
    %930 = vmatpush2.bf16.msra.mxu0 0
    %931 = vmatprep.mubr.bf16.mxu0 0
    %932 = vmatmul.mubr.bf16.gmra.mxu0 %v894
    %v933 = vpop.f32.mrf.mxu0
    %v934 = vadd.f32 0.0, %v933
    %v935 = vpop.f32.mrf.mxu0
    %v936 = vpop.f32.mrf.mxu0
    %v937 = vpop.f32.mrf.mxu0
    %938 = vdwg.mxu0
    %v939 = vadd.f32 %v781, %v934
    %v941 = vlaneseq
    %v942 = vshrl.u32 %v941, 7
    %v943 = vsub.s32 0, %v942
    %v944 = vrot.slane %v313, %v943
    %v946 = vadd.f32 %v939, %v944
    %947 = vst.msk [vmem:[#allocation8] sm:$0xff] %vm101, %v946
    %v948 = vrot.slane %v305, 4
    %949 = vrot.lane.b32.xlu0 %v306, 120
    %v950 = vpop.permute.xlu0 %949
    %v952 = vsel %vm314, %v948, 0
    %v955 = vsel %vm318, %v950, 0
    %957 = vmatprep.subr.bf16.mxu0 0
    %958 = vmatpush1.bf16.msra.mxu0 0
    %959 = vmatprep.subr.bf16.mxu0 0
    %960 = vmatpush1.bf16.msra.mxu0 0
    %961 = vmatprep.subr.bf16.mxu0 0
    %962 = vmatpush1.bf16.msra.mxu0 0
    %963 = vmatprep.subr.bf16.mxu0 0
    %964 = vmatpush1.bf16.msra.mxu0 0
    %965 = vmatprep.subr.bf16.mxu0 0
    %966 = vmatpush1.bf16.msra.mxu0 0
    %967 = vmatprep.subr.bf16.mxu0 0
    %968 = vmatpush1.bf16.msra.mxu0 0
    %969 = vmatprep.subr.bf16.mxu0 0
    %970 = vmatpush1.bf16.msra.mxu0 0
    %971 = vmatprep.subr.bf16.mxu0 0
    %972 = vmatpush1.bf16.msra.mxu0 %v955
    %973 = vmatprep.subr.bf16.mxu0 0
    %974 = vmatpush2.bf16.msra.mxu0 0
    %975 = vmatprep.subr.bf16.mxu0 0
    %976 = vmatpush2.bf16.msra.mxu0 0
    %977 = vmatprep.subr.bf16.mxu0 0
    %978 = vmatpush2.bf16.msra.mxu0 0
    %979 = vmatprep.subr.bf16.mxu0 0
    %980 = vmatpush2.bf16.msra.mxu0 0
    %981 = vmatprep.subr.bf16.mxu0 0
    %982 = vmatpush2.bf16.msra.mxu0 0
    %983 = vmatprep.subr.bf16.mxu0 0
    %984 = vmatpush2.bf16.msra.mxu0 0
    %985 = vmatprep.subr.bf16.mxu0 0
    %986 = vmatpush2.bf16.msra.mxu0 0
    %987 = vmatprep.subr.bf16.mxu0 0
    %988 = vmatpush2.bf16.msra.mxu0 0
    %989 = vmatprep.mubr.bf16.mxu0 0
    %990 = vmatmul.mubr.bf16.gmra.mxu0 %v952
    %v991 = vpop.f32.mrf.mxu0
    %v992 = vadd.f32 0.0, %v991
    %v993 = vpop.f32.mrf.mxu0
    %v994 = vpop.f32.mrf.mxu0
    %v995 = vpop.f32.mrf.mxu0
    %996 = vdwg.mxu0
    %v997 = vsel %vm314, %v992, -inf
    %998 = vmax.xlane.f32.xlu0 %v997
    %v999 = vpop.xlane.xlu0 %998
    %v1000 = vsub.f32 %v992, %v999
    %v1001 = vmul.f32 %v1000, 1.442695
    %v1002 = vpow.pop %v1001
    %v1003 = vsel %vm314, %v1002, 0.0
    %1004 = vadd.xlane.f32.xlu0 %v1003
    %v1005 = vpop.xlane.xlu0 %1004
    %v1006 = vrcp.pop %v1005
    %v1007 = vmul.f32 %v1002, %v1006
    %v1008 = vpack.c.bf16 %v1007, %v1007
    %v1009 = vrot.slane %v308, 4
    %v1011 = vsel %vm314, %v1008, 0
    %v1014 = vsel %vm318, %v1009, 0
    %1016 = vmatprep.subr.bf16.mxu0 0
    %1017 = vmatpush1.bf16.msra.mxu0 0
    %1018 = vmatprep.subr.bf16.mxu0 0
    %1019 = vmatpush1.bf16.msra.mxu0 0
    %1020 = vmatprep.subr.bf16.mxu0 0
    %1021 = vmatpush1.bf16.msra.mxu0 0
    %1022 = vmatprep.subr.bf16.mxu0 0
    %1023 = vmatpush1.bf16.msra.mxu0 0
    %1024 = vmatprep.subr.bf16.mxu0 0
    %1025 = vmatpush1.bf16.msra.mxu0 0
    %1026 = vmatprep.subr.bf16.mxu0 0
    %1027 = vmatpush1.bf16.msra.mxu0 0
    %1028 = vmatprep.subr.bf16.mxu0 0
    %1029 = vmatpush1.bf16.msra.mxu0 0
    %1030 = vmatprep.subr.bf16.mxu0 0
    %1031 = vmatpush1.bf16.msra.mxu0 %v1014
    %1032 = vmatprep.subr.bf16.mxu0 0
    %1033 = vmatpush2.bf16.msra.mxu0 0
    %1034 = vmatprep.subr.bf16.mxu0 0
    %1035 = vmatpush2.bf16.msra.mxu0 0
    %1036 = vmatprep.subr.bf16.mxu0 0
    %1037 = vmatpush2.bf16.msra.mxu0 0
    %1038 = vmatprep.subr.bf16.mxu0 0
    %1039 = vmatpush2.bf16.msra.mxu0 0
    %1040 = vmatprep.subr.bf16.mxu0 0
    %1041 = vmatpush2.bf16.msra.mxu0 0
    %1042 = vmatprep.subr.bf16.mxu0 0
    %1043 = vmatpush2.bf16.msra.mxu0 0
    %1044 = vmatprep.subr.bf16.mxu0 0
    %1045 = vmatpush2.bf16.msra.mxu0 0
    %1046 = vmatprep.subr.bf16.mxu0 0
    %1047 = vmatpush2.bf16.msra.mxu0 0
    %1048 = vmatprep.mubr.bf16.mxu0 0
    %1049 = vmatmul.mubr.bf16.gmra.mxu0 %v1011
    %v1050 = vpop.f32.mrf.mxu0
    %v1051 = vadd.f32 0.0, %v1050
    %v1052 = vpop.f32.mrf.mxu0
    %v1053 = vpop.f32.mrf.mxu0
    %v1054 = vpop.f32.mrf.mxu0
    %1055 = vdwg.mxu0
    %v1056 = vpack.c.bf16 %v1051, %v1051
    %1057 = vrot.lane.b32.xlu0 %v948, 120
    %v1058 = vpop.permute.xlu0 %1057
    %1059 = vrot.lane.b32.xlu0 %v425, 120
    %v1060 = vpop.permute.xlu0 %1059
    %v1062 = vsel %vm314, %v1058, 0
    %v1065 = vsel %vm318, %v1060, 0
    %1067 = vmatprep.subr.bf16.mxu0 0
    %1068 = vmatpush1.bf16.msra.mxu0 0
    %1069 = vmatprep.subr.bf16.mxu0 0
    %1070 = vmatpush1.bf16.msra.mxu0 0
    %1071 = vmatprep.subr.bf16.mxu0 0
    %1072 = vmatpush1.bf16.msra.mxu0 0
    %1073 = vmatprep.subr.bf16.mxu0 0
    %1074 = vmatpush1.bf16.msra.mxu0 0
    %1075 = vmatprep.subr.bf16.mxu0 0
    %1076 = vmatpush1.bf16.msra.mxu0 0
    %1077 = vmatprep.subr.bf16.mxu0 0
    %1078 = vmatpush1.bf16.msra.mxu0 0
    %1079 = vmatprep.subr.bf16.mxu0 0
    %1080 = vmatpush1.bf16.msra.mxu0 0
    %1081 = vmatprep.subr.bf16.mxu0 0
    %1082 = vmatpush1.bf16.msra.mxu0 %v1065
    %1083 = vmatprep.subr.bf16.mxu0 0
    %1084 = vmatpush2.bf16.msra.mxu0 0
    %1085 = vmatprep.subr.bf16.mxu0 0
    %1086 = vmatpush2.bf16.msra.mxu0 0
    %1087 = vmatprep.subr.bf16.mxu0 0
    %1088 = vmatpush2.bf16.msra.mxu0 0
    %1089 = vmatprep.subr.bf16.mxu0 0
    %1090 = vmatpush2.bf16.msra.mxu0 0
    %1091 = vmatprep.subr.bf16.mxu0 0
    %1092 = vmatpush2.bf16.msra.mxu0 0
    %1093 = vmatprep.subr.bf16.mxu0 0
    %1094 = vmatpush2.bf16.msra.mxu0 0
    %1095 = vmatprep.subr.bf16.mxu0 0
    %1096 = vmatpush2.bf16.msra.mxu0 0
    %1097 = vmatprep.subr.bf16.mxu0 0
    %1098 = vmatpush2.bf16.msra.mxu0 0
    %1099 = vmatprep.mubr.bf16.mxu0 0
    %1100 = vmatmul.mubr.bf16.gmra.mxu0 %v1062
    %v1101 = vpop.f32.mrf.mxu0
    %v1102 = vadd.f32 0.0, %v1101
    %v1103 = vpop.f32.mrf.mxu0
    %v1104 = vpop.f32.mrf.mxu0
    %v1105 = vpop.f32.mrf.mxu0
    %1106 = vdwg.mxu0
    %v1107 = vsel %vm314, %v1102, -inf
    %1108 = vmax.xlane.f32.xlu0 %v1107
    %v1109 = vpop.xlane.xlu0 %1108
    %v1110 = vsub.f32 %v1102, %v1109
    %v1111 = vmul.f32 %v1110, 1.442695
    %v1112 = vpow.pop %v1111
    %v1113 = vsel %vm314, %v1112, 0.0
    %1114 = vadd.xlane.f32.xlu0 %v1113
    %v1115 = vpop.xlane.xlu0 %1114
    %v1116 = vrcp.pop %v1115
    %v1117 = vmul.f32 %v1112, %v1116
    %v1118 = vpack.c.bf16 %v1117, %v1117
    %1119 = vrot.lane.b32.xlu0 %v1009, 120
    %v1120 = vpop.permute.xlu0 %1119
    %v1122 = vsel %vm314, %v1118, 0
    %v1125 = vsel %vm318, %v1120, 0
    %1127 = vmatprep.subr.bf16.mxu0 0
    %1128 = vmatpush1.bf16.msra.mxu0 0
    %1129 = vmatprep.subr.bf16.mxu0 0
    %1130 = vmatpush1.bf16.msra.mxu0 0
    %1131 = vmatprep.subr.bf16.mxu0 0
    %1132 = vmatpush1.bf16.msra.mxu0 0
    %1133 = vmatprep.subr.bf16.mxu0 0
    %1134 = vmatpush1.bf16.msra.mxu0 0
    %1135 = vmatprep.subr.bf16.mxu0 0
    %1136 = vmatpush1.bf16.msra.mxu0 0
    %1137 = vmatprep.subr.bf16.mxu0 0
    %1138 = vmatpush1.bf16.msra.mxu0 0
    %1139 = vmatprep.subr.bf16.mxu0 0
    %1140 = vmatpush1.bf16.msra.mxu0 0
    %1141 = vmatprep.subr.bf16.mxu0 0
    %1142 = vmatpush1.bf16.msra.mxu0 %v1125
    %1143 = vmatprep.subr.bf16.mxu0 0
    %1144 = vmatpush2.bf16.msra.mxu0 0
    %1145 = vmatprep.subr.bf16.mxu0 0
    %1146 = vmatpush2.bf16.msra.mxu0 0
    %1147 = vmatprep.subr.bf16.mxu0 0
    %1148 = vmatpush2.bf16.msra.mxu0 0
    %1149 = vmatprep.subr.bf16.mxu0 0
    %1150 = vmatpush2.bf16.msra.mxu0 0
    %1151 = vmatprep.subr.bf16.mxu0 0
    %1152 = vmatpush2.bf16.msra.mxu0 0
    %1153 = vmatprep.subr.bf16.mxu0 0
    %1154 = vmatpush2.bf16.msra.mxu0 0
    %1155 = vmatprep.subr.bf16.mxu0 0
    %1156 = vmatpush2.bf16.msra.mxu0 0
    %1157 = vmatprep.subr.bf16.mxu0 0
    %1158 = vmatpush2.bf16.msra.mxu0 0
    %1159 = vmatprep.mubr.bf16.mxu0 0
    %1160 = vmatmul.mubr.bf16.gmra.mxu0 %v1122
    %v1161 = vpop.f32.mrf.mxu0
    %v1162 = vadd.f32 0.0, %v1161
    %v1163 = vpop.f32.mrf.mxu0
    %v1164 = vpop.f32.mrf.mxu0
    %v1165 = vpop.f32.mrf.mxu0
    %1166 = vdwg.mxu0
    %v1167 = vpack.c.bf16 %v1162, %v1162
    %v1169 = vsel %vm314, %v1167, 0
    %1171 = vmatprep.subr.bf16.mxu0 0
    %1172 = vmatpush1.bf16.msra.mxu0 0
    %1173 = vmatprep.subr.bf16.mxu0 0
    %1174 = vmatpush1.bf16.msra.mxu0 0
    %1175 = vmatprep.subr.bf16.mxu0 0
    %1176 = vmatpush1.bf16.msra.mxu0 0
    %1177 = vmatprep.subr.bf16.mxu0 0
    %1178 = vmatpush1.bf16.msra.mxu0 0
    %1179 = vmatprep.subr.bf16.mxu0 0
    %1180 = vmatpush1.bf16.msra.mxu0 0
    %1181 = vmatprep.subr.bf16.mxu0 0
    %1182 = vmatpush1.bf16.msra.mxu0 0
    %1183 = vmatprep.subr.bf16.mxu0 0
    %1184 = vmatpush1.bf16.msra.mxu0 0
    %1185 = vmatprep.subr.bf16.mxu0 0
    %1186 = vmatpush1.bf16.msra.mxu0 %v538
    %1187 = vmatprep.subr.bf16.mxu0 0
    %1188 = vmatpush2.bf16.msra.mxu0 0
    %1189 = vmatprep.subr.bf16.mxu0 0
    %1190 = vmatpush2.bf16.msra.mxu0 0
    %1191 = vmatprep.subr.bf16.mxu0 0
    %1192 = vmatpush2.bf16.msra.mxu0 0
    %1193 = vmatprep.subr.bf16.mxu0 0
    %1194 = vmatpush2.bf16.msra.mxu0 0
    %1195 = vmatprep.subr.bf16.mxu0 0
    %1196 = vmatpush2.bf16.msra.mxu0 0
    %1197 = vmatprep.subr.bf16.mxu0 0
    %1198 = vmatpush2.bf16.msra.mxu0 0
    %1199 = vmatprep.subr.bf16.mxu0 0
    %1200 = vmatpush2.bf16.msra.mxu0 0
    %1201 = vmatprep.subr.bf16.mxu0 0
    %1202 = vmatpush2.bf16.msra.mxu0 0
    %1203 = vmatprep.mubr.bf16.mxu0 0
    %1204 = vmatmul.mubr.bf16.gmra.mxu0 %v1169
    %v1205 = vpop.f32.mrf.mxu0
    %v1206 = vadd.f32 0.0, %v1205
    %v1207 = vpop.f32.mrf.mxu0
    %v1208 = vpop.f32.mrf.mxu0
    %v1209 = vpop.f32.mrf.mxu0
    %1210 = vdwg.mxu0
    %v1212 = vsel %vm314, %v1056, 0
    %1214 = vmatprep.subr.bf16.mxu0 0
    %1215 = vmatpush1.bf16.msra.mxu0 0
    %1216 = vmatprep.subr.bf16.mxu0 0
    %1217 = vmatpush1.bf16.msra.mxu0 0
    %1218 = vmatprep.subr.bf16.mxu0 0
    %1219 = vmatpush1.bf16.msra.mxu0 0
    %1220 = vmatprep.subr.bf16.mxu0 0
    %1221 = vmatpush1.bf16.msra.mxu0 0
    %1222 = vmatprep.subr.bf16.mxu0 0
    %1223 = vmatpush1.bf16.msra.mxu0 0
    %1224 = vmatprep.subr.bf16.mxu0 0
    %1225 = vmatpush1.bf16.msra.mxu0 0
    %1226 = vmatprep.subr.bf16.mxu0 0
    %1227 = vmatpush1.bf16.msra.mxu0 0
    %1228 = vmatprep.subr.bf16.mxu0 0
    %1229 = vmatpush1.bf16.msra.mxu0 %v584
    %1230 = vmatprep.subr.bf16.mxu0 0
    %1231 = vmatpush2.bf16.msra.mxu0 0
    %1232 = vmatprep.subr.bf16.mxu0 0
    %1233 = vmatpush2.bf16.msra.mxu0 0
    %1234 = vmatprep.subr.bf16.mxu0 0
    %1235 = vmatpush2.bf16.msra.mxu0 0
    %1236 = vmatprep.subr.bf16.mxu0 0
    %1237 = vmatpush2.bf16.msra.mxu0 0
    %1238 = vmatprep.subr.bf16.mxu0 0
    %1239 = vmatpush2.bf16.msra.mxu0 0
    %1240 = vmatprep.subr.bf16.mxu0 0
    %1241 = vmatpush2.bf16.msra.mxu0 0
    %1242 = vmatprep.subr.bf16.mxu0 0
    %1243 = vmatpush2.bf16.msra.mxu0 0
    %1244 = vmatprep.subr.bf16.mxu0 0
    %1245 = vmatpush2.bf16.msra.mxu0 0
    %1246 = vmatprep.mubr.bf16.mxu0 0
    %1247 = vmatmul.mubr.bf16.gmra.mxu0 %v1212
    %v1248 = vpop.f32.mrf.mxu0
    %v1249 = vadd.f32 %v1206, %v1248
    %v1250 = vpop.f32.mrf.mxu0
    %v1251 = vpop.f32.mrf.mxu0
    %v1252 = vpop.f32.mrf.mxu0
    %1253 = vdwg.mxu0
    %1254 = vrot.lane.b32.xlu0 %v948, 112
    %v1255 = vpop.permute.xlu0 %1254
    %1256 = vrot.lane.b32.xlu0 %v307, 120
    %v1257 = vpop.permute.xlu0 %1256
    %v1259 = vsel %vm314, %v1255, 0
    %v1262 = vsel %vm318, %v1257, 0
    %1264 = vmatprep.subr.bf16.mxu0 0
    %1265 = vmatpush1.bf16.msra.mxu0 0
    %1266 = vmatprep.subr.bf16.mxu0 0
    %1267 = vmatpush1.bf16.msra.mxu0 0
    %1268 = vmatprep.subr.bf16.mxu0 0
    %1269 = vmatpush1.bf16.msra.mxu0 0
    %1270 = vmatprep.subr.bf16.mxu0 0
    %1271 = vmatpush1.bf16.msra.mxu0 0
    %1272 = vmatprep.subr.bf16.mxu0 0
    %1273 = vmatpush1.bf16.msra.mxu0 0
    %1274 = vmatprep.subr.bf16.mxu0 0
    %1275 = vmatpush1.bf16.msra.mxu0 0
    %1276 = vmatprep.subr.bf16.mxu0 0
    %1277 = vmatpush1.bf16.msra.mxu0 0
    %1278 = vmatprep.subr.bf16.mxu0 0
    %1279 = vmatpush1.bf16.msra.mxu0 %v1262
    %1280 = vmatprep.subr.bf16.mxu0 0
    %1281 = vmatpush2.bf16.msra.mxu0 0
    %1282 = vmatprep.subr.bf16.mxu0 0
    %1283 = vmatpush2.bf16.msra.mxu0 0
    %1284 = vmatprep.subr.bf16.mxu0 0
    %1285 = vmatpush2.bf16.msra.mxu0 0
    %1286 = vmatprep.subr.bf16.mxu0 0
    %1287 = vmatpush2.bf16.msra.mxu0 0
    %1288 = vmatprep.subr.bf16.mxu0 0
    %1289 = vmatpush2.bf16.msra.mxu0 0
    %1290 = vmatprep.subr.bf16.mxu0 0
    %1291 = vmatpush2.bf16.msra.mxu0 0
    %1292 = vmatprep.subr.bf16.mxu0 0
    %1293 = vmatpush2.bf16.msra.mxu0 0
    %1294 = vmatprep.subr.bf16.mxu0 0
    %1295 = vmatpush2.bf16.msra.mxu0 0
    %1296 = vmatprep.mubr.bf16.mxu0 0
    %1297 = vmatmul.mubr.bf16.gmra.mxu0 %v1259
    %v1298 = vpop.f32.mrf.mxu0
    %v1299 = vadd.f32 0.0, %v1298
    %v1300 = vpop.f32.mrf.mxu0
    %v1301 = vpop.f32.mrf.mxu0
    %v1302 = vpop.f32.mrf.mxu0
    %1303 = vdwg.mxu0
    %v1304 = vsel %vm314, %v1299, -inf
    %1305 = vmax.xlane.f32.xlu0 %v1304
    %v1306 = vpop.xlane.xlu0 %1305
    %v1307 = vsub.f32 %v1299, %v1306
    %v1308 = vmul.f32 %v1307, 1.442695
    %v1309 = vpow.pop %v1308
    %v1310 = vsel %vm314, %v1309, 0.0
    %1311 = vadd.xlane.f32.xlu0 %v1310
    %v1312 = vpop.xlane.xlu0 %1311
    %v1313 = vrcp.pop %v1312
    %v1314 = vmul.f32 %v1309, %v1313
    %v1315 = vpack.c.bf16 %v1314, %v1314
    %1316 = vrot.lane.b32.xlu0 %v1009, 112
    %v1317 = vpop.permute.xlu0 %1316
    %v1319 = vsel %vm314, %v1315, 0
    %v1322 = vsel %vm318, %v1317, 0
    %1324 = vmatprep.subr.bf16.mxu0 0
    %1325 = vmatpush1.bf16.msra.mxu0 0
    %1326 = vmatprep.subr.bf16.mxu0 0
    %1327 = vmatpush1.bf16.msra.mxu0 0
    %1328 = vmatprep.subr.bf16.mxu0 0
    %1329 = vmatpush1.bf16.msra.mxu0 0
    %1330 = vmatprep.subr.bf16.mxu0 0
    %1331 = vmatpush1.bf16.msra.mxu0 0
    %1332 = vmatprep.subr.bf16.mxu0 0
    %1333 = vmatpush1.bf16.msra.mxu0 0
    %1334 = vmatprep.subr.bf16.mxu0 0
    %1335 = vmatpush1.bf16.msra.mxu0 0
    %1336 = vmatprep.subr.bf16.mxu0 0
    %1337 = vmatpush1.bf16.msra.mxu0 0
    %1338 = vmatprep.subr.bf16.mxu0 0
    %1339 = vmatpush1.bf16.msra.mxu0 %v1322
    %1340 = vmatprep.subr.bf16.mxu0 0
    %1341 = vmatpush2.bf16.msra.mxu0 0
    %1342 = vmatprep.subr.bf16.mxu0 0
    %1343 = vmatpush2.bf16.msra.mxu0 0
    %1344 = vmatprep.subr.bf16.mxu0 0
    %1345 = vmatpush2.bf16.msra.mxu0 0
    %1346 = vmatprep.subr.bf16.mxu0 0
    %1347 = vmatpush2.bf16.msra.mxu0 0
    %1348 = vmatprep.subr.bf16.mxu0 0
    %1349 = vmatpush2.bf16.msra.mxu0 0
    %1350 = vmatprep.subr.bf16.mxu0 0
    %1351 = vmatpush2.bf16.msra.mxu0 0
    %1352 = vmatprep.subr.bf16.mxu0 0
    %1353 = vmatpush2.bf16.msra.mxu0 0
    %1354 = vmatprep.subr.bf16.mxu0 0
    %1355 = vmatpush2.bf16.msra.mxu0 0
    %1356 = vmatprep.mubr.bf16.mxu0 0
    %1357 = vmatmul.mubr.bf16.gmra.mxu0 %v1319
    %v1358 = vpop.f32.mrf.mxu0
    %v1359 = vadd.f32 0.0, %v1358
    %v1360 = vpop.f32.mrf.mxu0
    %v1361 = vpop.f32.mrf.mxu0
    %v1362 = vpop.f32.mrf.mxu0
    %1363 = vdwg.mxu0
    %v1364 = vpack.c.bf16 %v1359, %v1359
    %v1366 = vsel %vm314, %v1364, 0
    %1368 = vmatprep.subr.bf16.mxu0 0
    %1369 = vmatpush1.bf16.msra.mxu0 0
    %1370 = vmatprep.subr.bf16.mxu0 0
    %1371 = vmatpush1.bf16.msra.mxu0 0
    %1372 = vmatprep.subr.bf16.mxu0 0
    %1373 = vmatpush1.bf16.msra.mxu0 0
    %1374 = vmatprep.subr.bf16.mxu0 0
    %1375 = vmatpush1.bf16.msra.mxu0 0
    %1376 = vmatprep.subr.bf16.mxu0 0
    %1377 = vmatpush1.bf16.msra.mxu0 0
    %1378 = vmatprep.subr.bf16.mxu0 0
    %1379 = vmatpush1.bf16.msra.mxu0 0
    %1380 = vmatprep.subr.bf16.mxu0 0
    %1381 = vmatpush1.bf16.msra.mxu0 0
    %1382 = vmatprep.subr.bf16.mxu0 0
    %1383 = vmatpush1.bf16.msra.mxu0 %v739
    %1384 = vmatprep.subr.bf16.mxu0 0
    %1385 = vmatpush2.bf16.msra.mxu0 0
    %1386 = vmatprep.subr.bf16.mxu0 0
    %1387 = vmatpush2.bf16.msra.mxu0 0
    %1388 = vmatprep.subr.bf16.mxu0 0
    %1389 = vmatpush2.bf16.msra.mxu0 0
    %1390 = vmatprep.subr.bf16.mxu0 0
    %1391 = vmatpush2.bf16.msra.mxu0 0
    %1392 = vmatprep.subr.bf16.mxu0 0
    %1393 = vmatpush2.bf16.msra.mxu0 0
    %1394 = vmatprep.subr.bf16.mxu0 0
    %1395 = vmatpush2.bf16.msra.mxu0 0
    %1396 = vmatprep.subr.bf16.mxu0 0
    %1397 = vmatpush2.bf16.msra.mxu0 0
    %1398 = vmatprep.subr.bf16.mxu0 0
    %1399 = vmatpush2.bf16.msra.mxu0 0
    %1400 = vmatprep.mubr.bf16.mxu0 0
    %1401 = vmatmul.mubr.bf16.gmra.mxu0 %v1366
    %v1402 = vpop.f32.mrf.mxu0
    %v1403 = vadd.f32 0.0, %v1402
    %v1404 = vpop.f32.mrf.mxu0
    %v1405 = vpop.f32.mrf.mxu0
    %v1406 = vpop.f32.mrf.mxu0
    %1407 = vdwg.mxu0
    %v1408 = vadd.f32 %v1249, %v1403
    %1409 = vrot.lane.b32.xlu0 %v948, 104
    %v1410 = vpop.permute.xlu0 %1409
    %1411 = vrot.lane.b32.xlu0 %v785, 120
    %v1412 = vpop.permute.xlu0 %1411
    %v1414 = vsel %vm314, %v1410, 0
    %v1417 = vsel %vm318, %v1412, 0
    %1419 = vmatprep.subr.bf16.mxu0 0
    %1420 = vmatpush1.bf16.msra.mxu0 0
    %1421 = vmatprep.subr.bf16.mxu0 0
    %1422 = vmatpush1.bf16.msra.mxu0 0
    %1423 = vmatprep.subr.bf16.mxu0 0
    %1424 = vmatpush1.bf16.msra.mxu0 0
    %1425 = vmatprep.subr.bf16.mxu0 0
    %1426 = vmatpush1.bf16.msra.mxu0 0
    %1427 = vmatprep.subr.bf16.mxu0 0
    %1428 = vmatpush1.bf16.msra.mxu0 0
    %1429 = vmatprep.subr.bf16.mxu0 0
    %1430 = vmatpush1.bf16.msra.mxu0 0
    %1431 = vmatprep.subr.bf16.mxu0 0
    %1432 = vmatpush1.bf16.msra.mxu0 0
    %1433 = vmatprep.subr.bf16.mxu0 0
    %1434 = vmatpush1.bf16.msra.mxu0 %v1417
    %1435 = vmatprep.subr.bf16.mxu0 0
    %1436 = vmatpush2.bf16.msra.mxu0 0
    %1437 = vmatprep.subr.bf16.mxu0 0
    %1438 = vmatpush2.bf16.msra.mxu0 0
    %1439 = vmatprep.subr.bf16.mxu0 0
    %1440 = vmatpush2.bf16.msra.mxu0 0
    %1441 = vmatprep.subr.bf16.mxu0 0
    %1442 = vmatpush2.bf16.msra.mxu0 0
    %1443 = vmatprep.subr.bf16.mxu0 0
    %1444 = vmatpush2.bf16.msra.mxu0 0
    %1445 = vmatprep.subr.bf16.mxu0 0
    %1446 = vmatpush2.bf16.msra.mxu0 0
    %1447 = vmatprep.subr.bf16.mxu0 0
    %1448 = vmatpush2.bf16.msra.mxu0 0
    %1449 = vmatprep.subr.bf16.mxu0 0
    %1450 = vmatpush2.bf16.msra.mxu0 0
    %1451 = vmatprep.mubr.bf16.mxu0 0
    %1452 = vmatmul.mubr.bf16.gmra.mxu0 %v1414
    %v1453 = vpop.f32.mrf.mxu0
    %v1454 = vadd.f32 0.0, %v1453
    %v1455 = vpop.f32.mrf.mxu0
    %v1456 = vpop.f32.mrf.mxu0
    %v1457 = vpop.f32.mrf.mxu0
    %1458 = vdwg.mxu0
    %v1459 = vsel %vm314, %v1454, -inf
    %1460 = vmax.xlane.f32.xlu0 %v1459
    %v1461 = vpop.xlane.xlu0 %1460
    %v1462 = vsub.f32 %v1454, %v1461
    %v1463 = vmul.f32 %v1462, 1.442695
    %v1464 = vpow.pop %v1463
    %v1465 = vsel %vm314, %v1464, 0.0
    %1466 = vadd.xlane.f32.xlu0 %v1465
    %v1467 = vpop.xlane.xlu0 %1466
    %v1468 = vrcp.pop %v1467
    %v1469 = vmul.f32 %v1464, %v1468
    %v1470 = vpack.c.bf16 %v1469, %v1469
    %1471 = vrot.lane.b32.xlu0 %v1009, 104
    %v1472 = vpop.permute.xlu0 %1471
    %v1474 = vsel %vm314, %v1470, 0
    %v1477 = vsel %vm318, %v1472, 0
    %1479 = vmatprep.subr.bf16.mxu0 0
    %1480 = vmatpush1.bf16.msra.mxu0 0
    %1481 = vmatprep.subr.bf16.mxu0 0
    %1482 = vmatpush1.bf16.msra.mxu0 0
    %1483 = vmatprep.subr.bf16.mxu0 0
    %1484 = vmatpush1.bf16.msra.mxu0 0
    %1485 = vmatprep.subr.bf16.mxu0 0
    %1486 = vmatpush1.bf16.msra.mxu0 0
    %1487 = vmatprep.subr.bf16.mxu0 0
    %1488 = vmatpush1.bf16.msra.mxu0 0
    %1489 = vmatprep.subr.bf16.mxu0 0
    %1490 = vmatpush1.bf16.msra.mxu0 0
    %1491 = vmatprep.subr.bf16.mxu0 0
    %1492 = vmatpush1.bf16.msra.mxu0 0
    %1493 = vmatprep.subr.bf16.mxu0 0
    %1494 = vmatpush1.bf16.msra.mxu0 %v1477
    %1495 = vmatprep.subr.bf16.mxu0 0
    %1496 = vmatpush2.bf16.msra.mxu0 0
    %1497 = vmatprep.subr.bf16.mxu0 0
    %1498 = vmatpush2.bf16.msra.mxu0 0
    %1499 = vmatprep.subr.bf16.mxu0 0
    %1500 = vmatpush2.bf16.msra.mxu0 0
    %1501 = vmatprep.subr.bf16.mxu0 0
    %1502 = vmatpush2.bf16.msra.mxu0 0
    %1503 = vmatprep.subr.bf16.mxu0 0
    %1504 = vmatpush2.bf16.msra.mxu0 0
    %1505 = vmatprep.subr.bf16.mxu0 0
    %1506 = vmatpush2.bf16.msra.mxu0 0
    %1507 = vmatprep.subr.bf16.mxu0 0
    %1508 = vmatpush2.bf16.msra.mxu0 0
    %1509 = vmatprep.subr.bf16.mxu0 0
    %1510 = vmatpush2.bf16.msra.mxu0 0
    %1511 = vmatprep.mubr.bf16.mxu0 0
    %1512 = vmatmul.mubr.bf16.gmra.mxu0 %v1474
    %v1513 = vpop.f32.mrf.mxu0
    %v1514 = vadd.f32 0.0, %v1513
    %v1515 = vpop.f32.mrf.mxu0
    %v1516 = vpop.f32.mrf.mxu0
    %v1517 = vpop.f32.mrf.mxu0
    %1518 = vdwg.mxu0
    %v1519 = vpack.c.bf16 %v1514, %v1514
    %v1521 = vsel %vm314, %v1519, 0
    %1523 = vmatprep.subr.bf16.mxu0 0
    %1524 = vmatpush1.bf16.msra.mxu0 0
    %1525 = vmatprep.subr.bf16.mxu0 0
    %1526 = vmatpush1.bf16.msra.mxu0 0
    %1527 = vmatprep.subr.bf16.mxu0 0
    %1528 = vmatpush1.bf16.msra.mxu0 0
    %1529 = vmatprep.subr.bf16.mxu0 0
    %1530 = vmatpush1.bf16.msra.mxu0 0
    %1531 = vmatprep.subr.bf16.mxu0 0
    %1532 = vmatpush1.bf16.msra.mxu0 0
    %1533 = vmatprep.subr.bf16.mxu0 0
    %1534 = vmatpush1.bf16.msra.mxu0 0
    %1535 = vmatprep.subr.bf16.mxu0 0
    %1536 = vmatpush1.bf16.msra.mxu0 0
    %1537 = vmatprep.subr.bf16.mxu0 0
    %1538 = vmatpush1.bf16.msra.mxu0 %v897
    %1539 = vmatprep.subr.bf16.mxu0 0
    %1540 = vmatpush2.bf16.msra.mxu0 0
    %1541 = vmatprep.subr.bf16.mxu0 0
    %1542 = vmatpush2.bf16.msra.mxu0 0
    %1543 = vmatprep.subr.bf16.mxu0 0
    %1544 = vmatpush2.bf16.msra.mxu0 0
    %1545 = vmatprep.subr.bf16.mxu0 0
    %1546 = vmatpush2.bf16.msra.mxu0 0
    %1547 = vmatprep.subr.bf16.mxu0 0
    %1548 = vmatpush2.bf16.msra.mxu0 0
    %1549 = vmatprep.subr.bf16.mxu0 0
    %1550 = vmatpush2.bf16.msra.mxu0 0
    %1551 = vmatprep.subr.bf16.mxu0 0
    %1552 = vmatpush2.bf16.msra.mxu0 0
    %1553 = vmatprep.subr.bf16.mxu0 0
    %1554 = vmatpush2.bf16.msra.mxu0 0
    %1555 = vmatprep.mubr.bf16.mxu0 0
    %1556 = vmatmul.mubr.bf16.gmra.mxu0 %v1521
    %v1557 = vpop.f32.mrf.mxu0
    %v1558 = vadd.f32 0.0, %v1557
    %v1559 = vpop.f32.mrf.mxu0
    %v1560 = vpop.f32.mrf.mxu0
    %v1561 = vpop.f32.mrf.mxu0
    %1562 = vdwg.mxu0
    %v1563 = vadd.f32 %v1408, %v1558
    %v1564 = vadd.f32 %v1563, %v944
    %1565 = vst.msk [vmem:[#allocation8 + $0x8] sm:$0xff] %vm101, %v1564
    // Predicated region
    $region50: #{tpu_custom_call.1} parent=1 // pred_check
      _
    $region51: #{tpu_custom_call.1} parent=1 // pred_check_branch
      %1567 = sbr.rel (0) target = $region53
    $region52: #{tpu_custom_call.1} parent=1 // pred_region
      %s1569 = ssub.s32 256, 256
      %1570 = vsyncadd [#allocation4], %s1569
      %s1571 = sshll.u32 [#allocation8], 4
      %s1572 = int_to_ptr.vmem [resolvable:$true] %s1571
      %1577 = dma.vmem_to_hbm [thread:$0]  %s1572, 256, %s9, [#allocation4], 128, 128, 8
    $region53: #{tpu_custom_call.1} parent=1 // pred_fallthru
      _
    // Predicated region
    $region54: #{tpu_custom_call.1} parent=1 // pred_check
      _
    $region55: #{tpu_custom_call.1} parent=1 // pred_check_branch
      %1579 = sbr.rel (0) target = $region57
    $region56: #{tpu_custom_call.1} parent=1 // pred_region
      %1580 = dma.done [#allocation4], 256
    $region57: #{tpu_custom_call.1} parent=1 // pred_fallthru
      _
    %1581 = vsyncpa [#allocation3], 1
    %1582 = vsyncpa [#allocation6], 1
    %1583 = vsyncpa [#allocation4], 1

</llo_original>
